<compile_context>
chip_gen: v7x
topology: tpu7x:2x2x1
jax: 0.10.0
libtpu: 0.0.40
codegen_flags: <defaults>
</compile_context>

<pallas_src>
import functools
import math

import jax
import jax.numpy as jnp
from jax import lax
from jax.experimental import pallas as pl
from jax.experimental.pallas import tpu as pltpu

BN_EPS = 1e-5


# ----------------------------- fused Pallas kernel -----------------------------

def _ghost_kernel(relu, dw, oup, x_ref, w1_ref, b1_ref, w2_ref, b2_ref, o_ref, pad_ref):
    """One image: primary conv (matmul) -> cheap depthwise -> concat/truncate, all in VMEM.

    x_ref  : (1, Ho, Wo, Kdim)        im2col patches (Kdim = k*k*Cin), compute dtype
    w1_ref : (Kdim, init_ch)          primary weight, BN scale folded in (compute dtype)
    b1_ref : (1, init_ch)             primary BN bias (f32)
    w2_ref : (dw*dw, init_ch)         depthwise taps, BN scale folded in (f32)
    b2_ref : (1, init_ch)             depthwise BN bias (f32)
    o_ref  : (1, Ho, Wo, oup)         output; concat is just column layout
    pad_ref: (Ho+2p, Wo+2p, init_ch)  VMEM scratch holding the zero-padded x1 (f32)
    """
    _, Ho, Wo, Kdim = x_ref.shape
    init_ch = w1_ref.shape[1]
    p = dw // 2

    # --- primary conv: (Ho*Wo, Kdim) @ (Kdim, init_ch) on the MXU, f32 accumulate ---
    xm = x_ref[0].reshape(Ho * Wo, Kdim)
    y1 = jnp.dot(xm, w1_ref[...], preferred_element_type=jnp.float32)
    y1 = y1 + b1_ref[...]
    if relu:
        y1 = jnp.maximum(y1, 0.0)
    x1 = y1.reshape(Ho, Wo, init_ch)

    # --- cheap depthwise: x1 stays in VMEM, taps are shifted views of the padded scratch ---
    pad_ref[...] = jnp.zeros_like(pad_ref)
    pad_ref[p:p + Ho, p:p + Wo, :] = x1
    w2 = w2_ref[...]
    acc = None
    for ky in range(dw):
        for kx in range(dw):
            t = ky * dw + kx
            tap = pad_ref[ky:ky + Ho, kx:kx + Wo, :] * w2[t:t + 1, :].reshape(1, 1, init_ch)
            acc = tap if acc is None else acc + tap
    y2 = acc + b2_ref[...].reshape(1, 1, init_ch)
    if relu:
        y2 = jnp.maximum(y2, 0.0)

    # --- torch.cat([x1, x2], dim=1)[:, :oup] == write into adjacent channel ranges ---
    c1 = min(init_ch, oup)
    o_ref[0, :, :, 0:c1] = x1[:, :, 0:c1].astype(o_ref.dtype)
    if oup > init_ch:
        o_ref[0, :, :, init_ch:oup] = y2[:, :, 0:oup - init_ch].astype(o_ref.dtype)


# ----------------------------- JAX glue -----------------------------

def _extract_patches(x, k, stride):
    """NHWC -> (N, Ho, Wo, k*k*C) im2col patches, column order (ky, kx, c)."""
    if k == 1 and stride == 1:
        return x
    N, H, W, C = x.shape
    p = k // 2
    xp = jnp.pad(x, ((0, 0), (p, p), (p, p), (0, 0)))
    Ho = (H + 2 * p - k) // stride + 1
    Wo = (W + 2 * p - k) // stride + 1
    cols = []
    for ky in range(k):
        for kx in range(k):
            cols.append(xp[:, ky:ky + stride * (Ho - 1) + 1:stride,
                           kx:kx + stride * (Wo - 1) + 1:stride, :])
    return jnp.concatenate(cols, axis=-1)


def _fold_bn(gamma, beta, mean, var):
    scale = gamma / jnp.sqrt(var + BN_EPS)
    bias = beta - mean * scale
    return scale, bias


def ghost_module_apply(params, x_nchw, *, oup, kernel_size, dw_size, stride, relu,
                       compute_dtype=jnp.bfloat16):
    """Fused GhostModule forward. x_nchw: (N, Cin, H, W) -> (N, oup, Ho, Wo) f32."""
    w1 = params["primary_w"]            # (init_ch, Cin, k, k)
    w2 = params["cheap_w"]              # (init_ch, 1, dw, dw)   (ratio == 2)
    init_ch = w1.shape[0]
    k, dw = kernel_size, dw_size

    s1, b1 = _fold_bn(*params["primary_bn"])
    s2, b2 = _fold_bn(*params["cheap_bn"])
    # Fold BN scales into the conv weights so the kernel epilogue is just bias + act.
    w1m = (jnp.transpose(w1, (2, 3, 1, 0)).reshape(k * k * w1.shape[1], init_ch)
           * s1[None, :]).astype(compute_dtype)
    w2m = (w2.reshape(init_ch, dw * dw).T * s2[None, :]).astype(jnp.float32)

    x = jnp.transpose(x_nchw, (0, 2, 3, 1)).astype(compute_dtype)     # NCHW -> NHWC, bf16
    patches = _extract_patches(x, k, stride)                          # (N, Ho, Wo, Kdim)
    N, Ho, Wo, Kdim = patches.shape
    p = dw // 2

    out = pl.pallas_call(
        functools.partial(_ghost_kernel, relu, dw, oup),
        out_shape=jax.ShapeDtypeStruct((N, Ho, Wo, oup), jnp.float32),
        grid=(N,),
        in_specs=[
            pl.BlockSpec((1, Ho, Wo, Kdim), lambda n: (n, 0, 0, 0)),
            pl.BlockSpec((Kdim, init_ch), lambda n: (0, 0)),
            pl.BlockSpec((1, init_ch), lambda n: (0, 0)),
            pl.BlockSpec((dw * dw, init_ch), lambda n: (0, 0)),
            pl.BlockSpec((1, init_ch), lambda n: (0, 0)),
        ],
        out_specs=pl.BlockSpec((1, Ho, Wo, oup), lambda n: (n, 0, 0, 0)),
        scratch_shapes=[pltpu.VMEM((Ho + 2 * p, Wo + 2 * p, init_ch), jnp.float32)],
        compiler_params=pltpu.CompilerParams(dimension_semantics=("parallel",)),
    )(patches, w1m, b1.reshape(1, init_ch).astype(jnp.float32), w2m,
      b2.reshape(1, init_ch).astype(jnp.float32))
    return jnp.transpose(out, (0, 3, 1, 2))                           # back to NCHW


def _kaiming_normal(key, shape):
    # kaiming_normal_(mode='fan_out') as in nets/ghostnet.py weight_init
    cout, _, kh, kw = shape
    std = math.sqrt(2.0 / (cout * kh * kw))
    return jax.random.normal(key, shape, jnp.float32) * std


def _bn_init(c):
    # (gamma, beta, running_mean, running_var) at PyTorch defaults (eval mode)
    return (jnp.ones((c,), jnp.float32), jnp.zeros((c,), jnp.float32),
            jnp.zeros((c,), jnp.float32), jnp.ones((c,), jnp.float32))


class GhostModule:
    """Configuration + parameters + jitted fused-Pallas forward for GhostModule."""

    def __init__(self, inp, oup, kernel_size=1, ratio=2, dw_size=3, stride=1, relu=True,
                 *, seed=0):
        if ratio != 2:
            # TODO(synk): grouped cheap conv with ratio != 2 (output channel j reads input
            # channel j // (ratio-1)) needs a lane gather; not implemented in the fused kernel.
            raise NotImplementedError("fused kernel supports ratio=2 (GhostNet default)")
        self.oup = oup
        self.kernel_size, self.dw_size, self.stride, self.relu = kernel_size, dw_size, stride, relu
        init_ch = int(math.ceil(oup / ratio))
        new_ch = init_ch * (ratio - 1)
        k1, k2 = jax.random.split(jax.random.PRNGKey(seed))
        self.params = {
            "primary_w": _kaiming_normal(k1, (init_ch, inp, kernel_size, kernel_size)),
            "primary_bn": _bn_init(init_ch),
            "cheap_w": _kaiming_normal(k2, (new_ch, 1, dw_size, dw_size)),
            "cheap_bn": _bn_init(new_ch),
        }
        self._apply = jax.jit(functools.partial(
            ghost_module_apply, oup=oup, kernel_size=kernel_size, dw_size=dw_size,
            stride=stride, relu=relu))

    def __call__(self, x_nchw):
        return self._apply(self.params, x_nchw)


# ----------------------------- pure-JAX f32 reference -----------------------------

def ghost_module_ref(params, x_nchw, *, oup, kernel_size, dw_size, stride, relu):
    x = x_nchw.astype(jnp.float32)
    w1, w2 = params["primary_w"], params["cheap_w"]
    init_ch = w1.shape[0]
    s1, b1 = _fold_bn(*params["primary_bn"])
    s2, b2 = _fold_bn(*params["cheap_bn"])
    k, dw = kernel_size, dw_size
    y1 = lax.conv_general_dilated(x, w1, (stride, stride), [(k // 2, k // 2)] * 2,
                                  dimension_numbers=("NCHW", "OIHW", "NCHW"))
    y1 = y1 * s1[None, :, None, None] + b1[None, :, None, None]
    if relu:
        y1 = jnp.maximum(y1, 0.0)
    y2 = lax.conv_general_dilated(y1, w2, (1, 1), [(dw // 2, dw // 2)] * 2,
                                  feature_group_count=init_ch,
                                  dimension_numbers=("NCHW", "OIHW", "NCHW"))
    y2 = y2 * s2[None, :, None, None] + b2[None, :, None, None]
    if relu:
        y2 = jnp.maximum(y2, 0.0)
    return jnp.concatenate([y1, y2], axis=1)[:, :oup]


if __name__ == "__main__":
    kx1, kx2 = jax.random.split(jax.random.PRNGKey(0))

    # Default GhostModule config (the one GhostNet uses): 1x1 primary, 3x3 cheap dw, ratio=2.
    m1 = GhostModule(inp=16, oup=32, kernel_size=1, ratio=2, dw_size=3, stride=1, relu=True,
                     seed=0)
    x1 = jax.random.normal(kx1, (2, 16, 16, 16), jnp.float32)          # NCHW
    out1 = m1(x1)
    jax.block_until_ready(out1)
    assert out1.shape == (2, 32, 16, 16), out1.shape
    assert bool(jnp.isfinite(out1).all())
    ref1 = ghost_module_ref(m1.params, x1, oup=32, kernel_size=1, dw_size=3, stride=1, relu=True)
    assert jnp.allclose(out1, ref1, rtol=5e-2, atol=2e-1), float(jnp.max(jnp.abs(out1 - ref1)))

    # Channel-truncation path (oup < 2*init_channels) with relu=False.
    m2 = GhostModule(inp=8, oup=11, kernel_size=1, ratio=2, dw_size=3, stride=1, relu=False,
                     seed=1)
    x2 = jax.random.normal(kx2, (2, 8, 8, 8), jnp.float32)
    out2 = m2(x2)
    jax.block_until_ready(out2)
    assert out2.shape == (2, 11, 8, 8), out2.shape
    assert bool(jnp.isfinite(out2).all())
    ref2 = ghost_module_ref(m2.params, x2, oup=11, kernel_size=1, dw_size=3, stride=1, relu=False)
    assert jnp.allclose(out2, ref2, rtol=5e-2, atol=2e-1), float(jnp.max(jnp.abs(out2 - ref2)))

    print("KERNEL_OK")
</pallas_src>

<mosaic_0001>
module attributes {stable_mosaic.version = 11 : i64} {
  func.func @_ghost_kernel(%arg0: i32, %arg1: memref<1x16x16x16xbf16, #tpu.memory_space<vmem>>, %arg2: memref<16x16xbf16, #tpu.memory_space<vmem>>, %arg3: memref<1x16xf32, #tpu.memory_space<vmem>>, %arg4: memref<9x16xf32, #tpu.memory_space<vmem>>, %arg5: memref<1x16xf32, #tpu.memory_space<vmem>>, %arg6: memref<1x16x16x32xf32, #tpu.memory_space<vmem>>, %arg7: memref<18x18x16xf32, #tpu.memory_space<vmem>>) attributes {dimension_semantics = [#tpu.dimension_semantics<parallel>], iteration_bounds = array<i64: 2>, scalar_prefetch = 0 : i64, scratch_operands = 1 : i64, tpu.core_type = #tpu.core_type<tc>, window_params = [{transform_indices = @transform_0, window_bounds = array<i64: 1, 16, 16, 16>}, {pipeline_mode = #tpu.pipeline_mode<synchronous>, transform_indices = @transform_1, window_bounds = array<i64: 16, 16>}, {pipeline_mode = #tpu.pipeline_mode<synchronous>, transform_indices = @transform_2, window_bounds = array<i64: 1, 16>}, {pipeline_mode = #tpu.pipeline_mode<synchronous>, transform_indices = @transform_3, window_bounds = array<i64: 9, 16>}, {pipeline_mode = #tpu.pipeline_mode<synchronous>, transform_indices = @transform_4, window_bounds = array<i64: 1, 16>}, {transform_indices = @transform_5, window_bounds = array<i64: 1, 16, 16, 32>}]} {
    %c0 = arith.constant 0 : index
    %c0_0 = arith.constant 0 : index
    %c0_1 = arith.constant 0 : index
    %c0_2 = arith.constant 0 : index
    %0 = vector.load %arg1[%c0, %c0_0, %c0_1, %c0_2] : memref<1x16x16x16xbf16, #tpu.memory_space<vmem>>, vector<1x16x16x16xbf16>
    %1 = vector.shape_cast %0 : vector<1x16x16x16xbf16> to vector<16x16x16xbf16>
    %2 = vector.shape_cast %1 : vector<16x16x16xbf16> to vector<256x16xbf16>
    %c0_3 = arith.constant 0 : index
    %c0_4 = arith.constant 0 : index
    %3 = vector.load %arg2[%c0_3, %c0_4] : memref<16x16xbf16, #tpu.memory_space<vmem>>, vector<16x16xbf16>
    %cst = arith.constant dense<0.000000e+00> : vector<256x16xf32>
    %4 = tpu.matmul %2, %3, %cst {dimension_numbers = #tpu.dot_dimension_numbers<[1], [0], [0], [1], [0, 0, 1, 1], [], []>} : vector<256x16xbf16>, vector<16x16xbf16>, vector<256x16xf32> -> vector<256x16xf32>
    %c0_5 = arith.constant 0 : index
    %c0_6 = arith.constant 0 : index
    %5 = vector.load %arg3[%c0_5, %c0_6] : memref<1x16xf32, #tpu.memory_space<vmem>>, vector<1x16xf32>
    %6 = vector.broadcast %5 : vector<1x16xf32> to vector<256x16xf32>
    %7 = arith.addf %4, %6 : vector<256x16xf32>
    %cst_7 = arith.constant 0.000000e+00 : f32
    %8 = vector.broadcast %cst_7 : f32 to vector<256x16xf32>
    %9 = arith.maximumf %7, %8 : vector<256x16xf32>
    %10 = vector.shape_cast %9 : vector<256x16xf32> to vector<16x16x16xf32>
    %cst_8 = arith.constant 0.000000e+00 : f32
    %11 = vector.broadcast %cst_8 : f32 to vector<18x18x16xf32>
    %c0_9 = arith.constant 0 : index
    %c0_10 = arith.constant 0 : index
    %c0_11 = arith.constant 0 : index
    %12 = vector.load %arg7[%c0_9, %c0_10, %c0_11] : memref<18x18x16xf32, #tpu.memory_space<vmem>>, vector<18x18x16xf32>
    tpu.vector_store %arg7[%c0_9, %c0_10, %c0_11], %11 {strides = array<i32>} : memref<18x18x16xf32, #tpu.memory_space<vmem>>, vector<18x18x16xf32>,
    %c1 = arith.constant 1 : index
    %c1_12 = arith.constant 1 : index
    %c0_13 = arith.constant 0 : index
    %13 = vector.load %arg7[%c1, %c1_12, %c0_13] : memref<18x18x16xf32, #tpu.memory_space<vmem>>, vector<16x16x16xf32>
    tpu.vector_store %arg7[%c1, %c1_12, %c0_13], %10 {strides = array<i32>} : memref<18x18x16xf32, #tpu.memory_space<vmem>>, vector<16x16x16xf32>,
    %c0_14 = arith.constant 0 : index
    %c0_15 = arith.constant 0 : index
    %14 = vector.load %arg4[%c0_14, %c0_15] : memref<9x16xf32, #tpu.memory_space<vmem>>, vector<9x16xf32>
    %c0_16 = arith.constant 0 : index
    %c0_17 = arith.constant 0 : index
    %c0_18 = arith.constant 0 : index
    %15 = vector.load %arg7[%c0_16, %c0_17, %c0_18] : memref<18x18x16xf32, #tpu.memory_space<vmem>>, vector<16x16x16xf32>
    %16 = vector.extract_strided_slice %14 {offsets = [0, 0], sizes = [1, 16], strides = [1, 1]} : vector<9x16xf32> to vector<1x16xf32>
    %17 = vector.shape_cast %16 : vector<1x16xf32> to vector<1x1x16xf32>
    %18 = vector.broadcast %17 : vector<1x1x16xf32> to vector<16x16x16xf32>
    %19 = arith.mulf %15, %18 : vector<16x16x16xf32>
    %c0_19 = arith.constant 0 : index
    %c1_20 = arith.constant 1 : index
    %c0_21 = arith.constant 0 : index
    %20 = vector.load %arg7[%c0_19, %c1_20, %c0_21] : memref<18x18x16xf32, #tpu.memory_space<vmem>>, vector<16x16x16xf32>
    %21 = vector.extract_strided_slice %14 {offsets = [1, 0], sizes = [1, 16], strides = [1, 1]} : vector<9x16xf32> to vector<1x16xf32>
    %22 = vector.shape_cast %21 : vector<1x16xf32> to vector<1x1x16xf32>
    %23 = vector.broadcast %22 : vector<1x1x16xf32> to vector<16x16x16xf32>
    %24 = arith.mulf %20, %23 : vector<16x16x16xf32>
    %25 = arith.addf %19, %24 : vector<16x16x16xf32>
    %c0_22 = arith.constant 0 : index
    %c2 = arith.constant 2 : index
    %c0_23 = arith.constant 0 : index
    %26 = vector.load %arg7[%c0_22, %c2, %c0_23] : memref<18x18x16xf32, #tpu.memory_space<vmem>>, vector<16x16x16xf32>
    %27 = vector.extract_strided_slice %14 {offsets = [2, 0], sizes = [1, 16], strides = [1, 1]} : vector<9x16xf32> to vector<1x16xf32>
    %28 = vector.shape_cast %27 : vector<1x16xf32> to vector<1x1x16xf32>
    %29 = vector.broadcast %28 : vector<1x1x16xf32> to vector<16x16x16xf32>
    %30 = arith.mulf %26, %29 : vector<16x16x16xf32>
    %31 = arith.addf %25, %30 : vector<16x16x16xf32>
    %c1_24 = arith.constant 1 : index
    %c0_25 = arith.constant 0 : index
    %c0_26 = arith.constant 0 : index
    %32 = vector.load %arg7[%c1_24, %c0_25, %c0_26] : memref<18x18x16xf32, #tpu.memory_space<vmem>>, vector<16x16x16xf32>
    %33 = vector.extract_strided_slice %14 {offsets = [3, 0], sizes = [1, 16], strides = [1, 1]} : vector<9x16xf32> to vector<1x16xf32>
    %34 = vector.shape_cast %33 : vector<1x16xf32> to vector<1x1x16xf32>
    %35 = vector.broadcast %34 : vector<1x1x16xf32> to vector<16x16x16xf32>
    %36 = arith.mulf %32, %35 : vector<16x16x16xf32>
    %37 = arith.addf %31, %36 : vector<16x16x16xf32>
    %c1_27 = arith.constant 1 : index
    %c1_28 = arith.constant 1 : index
    %c0_29 = arith.constant 0 : index
    %38 = vector.load %arg7[%c1_27, %c1_28, %c0_29] : memref<18x18x16xf32, #tpu.memory_space<vmem>>, vector<16x16x16xf32>
    %39 = vector.extract_strided_slice %14 {offsets = [4, 0], sizes = [1, 16], strides = [1, 1]} : vector<9x16xf32> to vector<1x16xf32>
    %40 = vector.shape_cast %39 : vector<1x16xf32> to vector<1x1x16xf32>
    %41 = vector.broadcast %40 : vector<1x1x16xf32> to vector<16x16x16xf32>
    %42 = arith.mulf %38, %41 : vector<16x16x16xf32>
    %43 = arith.addf %37, %42 : vector<16x16x16xf32>
    %c1_30 = arith.constant 1 : index
    %c2_31 = arith.constant 2 : index
    %c0_32 = arith.constant 0 : index
    %44 = vector.load %arg7[%c1_30, %c2_31, %c0_32] : memref<18x18x16xf32, #tpu.memory_space<vmem>>, vector<16x16x16xf32>
    %45 = vector.extract_strided_slice %14 {offsets = [5, 0], sizes = [1, 16], strides = [1, 1]} : vector<9x16xf32> to vector<1x16xf32>
    %46 = vector.shape_cast %45 : vector<1x16xf32> to vector<1x1x16xf32>
    %47 = vector.broadcast %46 : vector<1x1x16xf32> to vector<16x16x16xf32>
    %48 = arith.mulf %44, %47 : vector<16x16x16xf32>
    %49 = arith.addf %43, %48 : vector<16x16x16xf32>
    %c2_33 = arith.constant 2 : index
    %c0_34 = arith.constant 0 : index
    %c0_35 = arith.constant 0 : index
    %50 = vector.load %arg7[%c2_33, %c0_34, %c0_35] : memref<18x18x16xf32, #tpu.memory_space<vmem>>, vector<16x16x16xf32>
    %51 = vector.extract_strided_slice %14 {offsets = [6, 0], sizes = [1, 16], strides = [1, 1]} : vector<9x16xf32> to vector<1x16xf32>
    %52 = vector.shape_cast %51 : vector<1x16xf32> to vector<1x1x16xf32>
    %53 = vector.broadcast %52 : vector<1x1x16xf32> to vector<16x16x16xf32>
    %54 = arith.mulf %50, %53 : vector<16x16x16xf32>
    %55 = arith.addf %49, %54 : vector<16x16x16xf32>
    %c2_36 = arith.constant 2 : index
    %c1_37 = arith.constant 1 : index
    %c0_38 = arith.constant 0 : index
    %56 = vector.load %arg7[%c2_36, %c1_37, %c0_38] : memref<18x18x16xf32, #tpu.memory_space<vmem>>, vector<16x16x16xf32>
    %57 = vector.extract_strided_slice %14 {offsets = [7, 0], sizes = [1, 16], strides = [1, 1]} : vector<9x16xf32> to vector<1x16xf32>
    %58 = vector.shape_cast %57 : vector<1x16xf32> to vector<1x1x16xf32>
    %59 = vector.broadcast %58 : vector<1x1x16xf32> to vector<16x16x16xf32>
    %60 = arith.mulf %56, %59 : vector<16x16x16xf32>
    %61 = arith.addf %55, %60 : vector<16x16x16xf32>
    %c2_39 = arith.constant 2 : index
    %c2_40 = arith.constant 2 : index
    %c0_41 = arith.constant 0 : index
    %62 = vector.load %arg7[%c2_39, %c2_40, %c0_41] : memref<18x18x16xf32, #tpu.memory_space<vmem>>, vector<16x16x16xf32>
    %63 = vector.extract_strided_slice %14 {offsets = [8, 0], sizes = [1, 16], strides = [1, 1]} : vector<9x16xf32> to vector<1x16xf32>
    %64 = vector.shape_cast %63 : vector<1x16xf32> to vector<1x1x16xf32>
    %65 = vector.broadcast %64 : vector<1x1x16xf32> to vector<16x16x16xf32>
    %66 = arith.mulf %62, %65 : vector<16x16x16xf32>
    %67 = arith.addf %61, %66 : vector<16x16x16xf32>
    %c0_42 = arith.constant 0 : index
    %c0_43 = arith.constant 0 : index
    %68 = vector.load %arg5[%c0_42, %c0_43] : memref<1x16xf32, #tpu.memory_space<vmem>>, vector<1x16xf32>
    %69 = vector.shape_cast %68 : vector<1x16xf32> to vector<1x1x16xf32>
    %70 = vector.broadcast %69 : vector<1x1x16xf32> to vector<16x16x16xf32>
    %71 = arith.addf %67, %70 : vector<16x16x16xf32>
    %cst_44 = arith.constant 0.000000e+00 : f32
    %72 = vector.broadcast %cst_44 : f32 to vector<16x16x16xf32>
    %73 = arith.maximumf %71, %72 : vector<16x16x16xf32>
    %c0_45 = arith.constant 0 : index
    %c0_46 = arith.constant 0 : index
    %c0_47 = arith.constant 0 : index
    %c0_48 = arith.constant 0 : index
    %74 = vector.load %arg6[%c0_45, %c0_46, %c0_47, %c0_48] : memref<1x16x16x32xf32, #tpu.memory_space<vmem>>, vector<1x16x16x16xf32>
    %75 = vector.shape_cast %74 : vector<1x16x16x16xf32> to vector<16x16x16xf32>
    %76 = vector.shape_cast %10 : vector<16x16x16xf32> to vector<1x16x16x16xf32>
    tpu.vector_store %arg6[%c0_45, %c0_46, %c0_47, %c0_48], %76 {strides = array<i32>} : memref<1x16x16x32xf32, #tpu.memory_space<vmem>>, vector<1x16x16x16xf32>,
    %c0_49 = arith.constant 0 : index
    %c0_50 = arith.constant 0 : index
    %c0_51 = arith.constant 0 : index
    %c16 = arith.constant 16 : index
    %77 = vector.load %arg6[%c0_49, %c0_50, %c0_51, %c16] : memref<1x16x16x32xf32, #tpu.memory_space<vmem>>, vector<1x16x16x16xf32>
    %78 = vector.shape_cast %77 : vector<1x16x16x16xf32> to vector<16x16x16xf32>
    %79 = vector.shape_cast %73 : vector<16x16x16xf32> to vector<1x16x16x16xf32>
    tpu.vector_store %arg6[%c0_49, %c0_50, %c0_51, %c16], %79 {strides = array<i32>} : memref<1x16x16x32xf32, #tpu.memory_space<vmem>>, vector<1x16x16x16xf32>,
    return
  }
  func.func @transform_0(%arg0: i32) -> (i32, i32, i32, i32) {
    %c0_i32 = arith.constant 0 : i32
    %c0_i32_0 = arith.constant 0 : i32
    %c0_i32_1 = arith.constant 0 : i32
    %c0_i32_2 = arith.constant 0 : i32
    return %arg0, %c0_i32, %c0_i32_0, %c0_i32_1 : i32, i32, i32, i32
  }
  func.func @transform_1(%arg0: i32) -> (i32, i32) {
    %c0_i32 = arith.constant 0 : i32
    %c0_i32_0 = arith.constant 0 : i32
    %c0_i32_1 = arith.constant 0 : i32
    return %c0_i32, %c0_i32_0 : i32, i32
  }
  func.func @transform_2(%arg0: i32) -> (i32, i32) {
    %c0_i32 = arith.constant 0 : i32
    %c0_i32_0 = arith.constant 0 : i32
    %c0_i32_1 = arith.constant 0 : i32
    return %c0_i32, %c0_i32_0 : i32, i32
  }
  func.func @transform_3(%arg0: i32) -> (i32, i32) {
    %c0_i32 = arith.constant 0 : i32
    %c0_i32_0 = arith.constant 0 : i32
    %c0_i32_1 = arith.constant 0 : i32
    return %c0_i32, %c0_i32_0 : i32, i32
  }
  func.func @transform_4(%arg0: i32) -> (i32, i32) {
    %c0_i32 = arith.constant 0 : i32
    %c0_i32_0 = arith.constant 0 : i32
    %c0_i32_1 = arith.constant 0 : i32
    return %c0_i32, %c0_i32_0 : i32, i32
  }
  func.func @transform_5(%arg0: i32) -> (i32, i32, i32, i32) {
    %c0_i32 = arith.constant 0 : i32
    %c0_i32_0 = arith.constant 0 : i32
    %c0_i32_1 = arith.constant 0 : i32
    %c0_i32_2 = arith.constant 0 : i32
    return %arg0, %c0_i32, %c0_i32_0, %c0_i32_1 : i32, i32, i32, i32
  }
}

</mosaic_0001>

<llo_original>
// kernel: ghost_module_apply.1
$region0: #{ghost_module_apply.1}
  #allocation0 [shape = 'u32[]', space=smem, size = 0x4, offset = 0x4, fixed_abs, tag = 'smem constant byte address 0x4 - core index']
  #allocation1 [shape = 'u32[144,128]{1,0:T(1,128)}', space=vmem, size = 0x12000, scoped, tag = 'internal scratch']
  #allocation2 [shape = 'f32[18,18,16]{2,1,0:T(8,128)}', space=vmem, size = 0x36000, scoped, tag = 'scratch operand']
  %s0 = inlined_call_operand.vmem [shape: bf16[2,16,16,16], index: 0, kind: input, shape index: {}]
  %s1 = inlined_call_operand.vmem [shape: bf16[16,16], index: 1, kind: input, shape index: {}]
  %s2 = inlined_call_operand.vmem [shape: f32[1,16], index: 2, kind: input, shape index: {}]
  %s3 = inlined_call_operand.vmem [shape: f32[9,16], index: 3, kind: input, shape index: {}]
  %s4 = inlined_call_operand.vmem [shape: f32[1,16], index: 4, kind: input, shape index: {}]
  %s5 = inlined_call_operand.hbm [shape: f32[2,16,16,32], index: 5, kind: output, shape index: {}]
  %s6 = sld [smem:[#allocation0]]
  $region53: #{ghost_module_apply.1} parent=0
    _
  %s8 = ssub.s32 1, %s6
  %s9 = scalar_select 0, %s8, %s6
  $region1: #{ghost_module_apply.1} parent=0
    #allocation3 [shape = 'u8[262144]{0}', space=vmem, size = 0x40000, scoped, tag = 'output window, operand 0']
    #allocation4 [shape = 's32[2]{0}', space=sflag, size = 0x8, scoped, tag = 'scoped memory for ghost_module_apply.1']
    %10 = vsyncpa [#allocation4], 0
    %s11 = scalar_lea.sflag [#allocation4], 1
    %12 = vsyncpa %s11, 0
    loop: start=0, step=1, limit=4
    $region2: #{ghost_module_apply.1} parent=1 // loop_pre_header
      _
    $region3: #{ghost_module_apply.1} parent=1 // loop_header
      %s14 = sphi 0, %s18
      %p15 = scmp.ge.s32.totalorder %s14, 4
      %s24 = sphi 0, %s26
      %s27 = sphi 0, %s24
      %s28 = sphi 0, %s27
      %s44 = sphi 0, %s28
      %s48 = sphi 0, %s48
      %s50 = sphi 0, %s48
      %s51 = sphi 0, %s50
      %s65 = sphi 0, %s51
      %s69 = sphi 0, %s69
      %s71 = sphi 0, %s69
      %s72 = sphi 0, %s71
      %s86 = sphi 0, %s72
      %s90 = sphi 0, %s90
      %s92 = sphi 0, %s90
      %s93 = sphi 0, %s92
      %s107 = sphi 0, %s93
      %s111 = sphi 0, %s111
      %s113 = sphi 0, %s111
      %s114 = sphi 0, %s113
      %s128 = sphi 0, %s114
      %s134 = sphi 0, %s136
      %s137 = sphi 0, %s134
      %s138 = sphi 0, %s137
      %s154 = sphi 0, %s138
    $region4: #{ghost_module_apply.1} parent=1 // loop_header_branch
      %17 = sbr.rel (%p15) target = $region8
    $region5: #{ghost_module_apply.1} parent=1 // loop_body
      %s19 = ssub.s32 %s14, 1
      %s20 = ssub.s32 %s14, 2
      %s21 = sadd.s32 %s14, 1
      %s22 = ssub.s32 %s14, %s21
      %p23 = scmp.eq.s32.totalorder %s22, 0
      %s25 = sadd.s32 %s24, 1
      %s26 = scalar_select %p23, %s24, %s25
      %p29 = pneg %p23
      %p30 = scmp.eq.s32.totalorder %s14, 1
      %p31 = por %p29, %p30
      %p32 = scmp.ne.s32.totalorder %s24, %s27
      %p33 = scmp.eq.s32.totalorder %s14, 0
      %p34 = por %p32, %p33
      %p35 = scmp.ne.s32.totalorder %s24, %s27
      %p36 = scmp.eq.s32.totalorder %s19, 1
      %p37 = por %p35, %p36
      %p38 = scmp.ne.s32.totalorder %s27, %s28
      %p39 = scmp.eq.s32.totalorder %s19, 0
      %p40 = por %p38, %p39
      %p41 = scmp.ne.s32.totalorder %s27, %s28
      %p42 = scmp.eq.s32.totalorder %s20, 1
      %p43 = por %p41, %p42
      %p45 = scmp.ne.s32.totalorder %s28, %s44
      %p46 = scmp.eq.s32.totalorder %s20, 0
      %p47 = por %p45, %p46
      %s49 = sadd.s32 %s48, 1
      %p52 = scmp.eq.s32.totalorder %s14, 1
      %p53 = scmp.ne.s32.totalorder %s48, %s50
      %p54 = scmp.eq.s32.totalorder %s14, 0
      %p55 = por %p53, %p54
      %p56 = scmp.ne.s32.totalorder %s48, %s50
      %p57 = scmp.eq.s32.totalorder %s19, 1
      %p58 = por %p56, %p57
      %p59 = scmp.ne.s32.totalorder %s50, %s51
      %p60 = scmp.eq.s32.totalorder %s19, 0
      %p61 = por %p59, %p60
      %p62 = scmp.ne.s32.totalorder %s50, %s51
      %p63 = scmp.eq.s32.totalorder %s20, 1
      %p64 = por %p62, %p63
      %p66 = scmp.ne.s32.totalorder %s51, %s65
      %p67 = scmp.eq.s32.totalorder %s20, 0
      %p68 = por %p66, %p67
      %s70 = sadd.s32 %s69, 1
      %p73 = scmp.eq.s32.totalorder %s14, 1
      %p74 = scmp.ne.s32.totalorder %s69, %s71
      %p75 = scmp.eq.s32.totalorder %s14, 0
      %p76 = por %p74, %p75
      %p77 = scmp.ne.s32.totalorder %s69, %s71
      %p78 = scmp.eq.s32.totalorder %s19, 1
      %p79 = por %p77, %p78
      %p80 = scmp.ne.s32.totalorder %s71, %s72
      %p81 = scmp.eq.s32.totalorder %s19, 0
      %p82 = por %p80, %p81
      %p83 = scmp.ne.s32.totalorder %s71, %s72
      %p84 = scmp.eq.s32.totalorder %s20, 1
      %p85 = por %p83, %p84
      %p87 = scmp.ne.s32.totalorder %s72, %s86
      %p88 = scmp.eq.s32.totalorder %s20, 0
      %p89 = por %p87, %p88
      %s91 = sadd.s32 %s90, 1
      %p94 = scmp.eq.s32.totalorder %s14, 1
      %p95 = scmp.ne.s32.totalorder %s90, %s92
      %p96 = scmp.eq.s32.totalorder %s14, 0
      %p97 = por %p95, %p96
      %p98 = scmp.ne.s32.totalorder %s90, %s92
      %p99 = scmp.eq.s32.totalorder %s19, 1
      %p100 = por %p98, %p99
      %p101 = scmp.ne.s32.totalorder %s92, %s93
      %p102 = scmp.eq.s32.totalorder %s19, 0
      %p103 = por %p101, %p102
      %p104 = scmp.ne.s32.totalorder %s92, %s93
      %p105 = scmp.eq.s32.totalorder %s20, 1
      %p106 = por %p104, %p105
      %p108 = scmp.ne.s32.totalorder %s93, %s107
      %p109 = scmp.eq.s32.totalorder %s20, 0
      %p110 = por %p108, %p109
      %s112 = sadd.s32 %s111, 1
      %p115 = scmp.eq.s32.totalorder %s14, 1
      %p116 = scmp.ne.s32.totalorder %s111, %s113
      %p117 = scmp.eq.s32.totalorder %s14, 0
      %p118 = por %p116, %p117
      %p119 = scmp.ne.s32.totalorder %s111, %s113
      %p120 = scmp.eq.s32.totalorder %s19, 1
      %p121 = por %p119, %p120
      %p122 = scmp.ne.s32.totalorder %s113, %s114
      %p123 = scmp.eq.s32.totalorder %s19, 0
      %p124 = por %p122, %p123
      %p125 = scmp.ne.s32.totalorder %s113, %s114
      %p126 = scmp.eq.s32.totalorder %s20, 1
      %p127 = por %p125, %p126
      %p129 = scmp.ne.s32.totalorder %s114, %s128
      %p130 = scmp.eq.s32.totalorder %s20, 0
      %p131 = por %p129, %p130
      %s132 = ssub.s32 %s14, %s21
      %p133 = scmp.eq.s32.totalorder %s132, 0
      %s135 = sadd.s32 %s134, 1
      %s136 = scalar_select %p133, %s134, %s135
      %p139 = pneg %p133
      %p140 = scmp.eq.s32.totalorder %s14, 1
      %p141 = por %p139, %p140
      %p142 = scmp.ne.s32.totalorder %s134, %s137
      %p143 = scmp.eq.s32.totalorder %s14, 0
      %p144 = por %p142, %p143
      %p145 = scmp.ne.s32.totalorder %s134, %s137
      %p146 = scmp.eq.s32.totalorder %s19, 1
      %p147 = por %p145, %p146
      %p148 = scmp.ne.s32.totalorder %s137, %s138
      %p149 = scmp.eq.s32.totalorder %s19, 0
      %p150 = por %p148, %p149
      %p151 = scmp.ne.s32.totalorder %s137, %s138
      %p152 = scmp.eq.s32.totalorder %s20, 1
      %p153 = por %p151, %p152
      %p155 = scmp.ne.s32.totalorder %s138, %s154
      %p156 = scmp.eq.s32.totalorder %s20, 0
      %p157 = por %p155, %p156
      %p158 = scmp.le.s32.totalorder 1, %s14
      %p159 = scmp.lt.s32.totalorder %s14, 3
      %p160 = pnand %p158, %p159
      %p161 = pneg %p160
      // Predicated region
      $region9: #{ghost_module_apply.1} parent=5 // pred_check
        _
      $region10: #{ghost_module_apply.1} parent=5 // pred_check_branch
        %163 = sbr.rel (%p160) target = $region12
      $region11: #{ghost_module_apply.1} parent=5 // pred_region
        %s164 = ssub.s32 %s14, 1
        // Predicated region
        $region13: #{ghost_module_apply.1} parent=11 // pred_check
          %p165 = pneg %p61
        $region14: #{ghost_module_apply.1} parent=11 // pred_check_branch
          %167 = sbr.rel (%p165) target = $region16
        $region15: #{ghost_module_apply.1} parent=11 // pred_region
          _
        $region16: #{ghost_module_apply.1} parent=11 // pred_fallthru
          _
        // Predicated region
        $region17: #{ghost_module_apply.1} parent=11 // pred_check
          %p168 = pneg %p82
        $region18: #{ghost_module_apply.1} parent=11 // pred_check_branch
          %170 = sbr.rel (%p168) target = $region20
        $region19: #{ghost_module_apply.1} parent=11 // pred_region
          _
        $region20: #{ghost_module_apply.1} parent=11 // pred_fallthru
          _
        // Predicated region
        $region21: #{ghost_module_apply.1} parent=11 // pred_check
          %p171 = pneg %p103
        $region22: #{ghost_module_apply.1} parent=11 // pred_check_branch
          %173 = sbr.rel (%p171) target = $region24
        $region23: #{ghost_module_apply.1} parent=11 // pred_region
          _
        $region24: #{ghost_module_apply.1} parent=11 // pred_fallthru
          _
        // Predicated region
        $region25: #{ghost_module_apply.1} parent=11 // pred_check
          %p174 = pneg %p124
        $region26: #{ghost_module_apply.1} parent=11 // pred_check_branch
          %176 = sbr.rel (%p174) target = $region28
        $region27: #{ghost_module_apply.1} parent=11 // pred_region
          _
        $region28: #{ghost_module_apply.1} parent=11 // pred_fallthru
          _
      $region12: #{ghost_module_apply.1} parent=5 // pred_fallthru
        _
      %p177 = scmp.lt.s32.totalorder %s14, 2
      // Predicated region
      $region29: #{ghost_module_apply.1} parent=5 // pred_check
        %p178 = pneg %p177
      $region30: #{ghost_module_apply.1} parent=5 // pred_check_branch
        %180 = sbr.rel (%p178) target = $region32
      $region31: #{ghost_module_apply.1} parent=5 // pred_region
        // Predicated region
        $region33: #{ghost_module_apply.1} parent=31 // pred_check
          %p181 = pneg %p34
        $region34: #{ghost_module_apply.1} parent=31 // pred_check_branch
          %183 = sbr.rel (%p181) target = $region36
        $region35: #{ghost_module_apply.1} parent=31 // pred_region
          %p184 = scmp.lt.s32.totalorder %s14, 1
          %s185 = scalar_select %p184, %s14, 1
          %s186 = smul.addr %s185, 32
          %s187 = smul.addr %s186, 4
          %s188 = scalar_lea.vmem %s0, %s187
        $region36: #{ghost_module_apply.1} parent=31 // pred_fallthru
          _
      $region32: #{ghost_module_apply.1} parent=5 // pred_fallthru
        _
      %p189 = scmp.le.s32.totalorder 1, %s14
      %p190 = scmp.lt.s32.totalorder %s14, 3
      %p191 = pnand %p189, %p190
      %p192 = pneg %p191
      // Predicated region
      $region37: #{ghost_module_apply.1} parent=5 // pred_check
        _
      $region38: #{ghost_module_apply.1} parent=5 // pred_check_branch
        %194 = sbr.rel (%p191) target = $region40
      $region39: #{ghost_module_apply.1} parent=5 // pred_region
        %s195 = ssub.s32 %s14, 1
        %p196 = scmp.lt.s32.totalorder %s19, 1
        %s197 = scalar_select %p196, %s19, 1
        %s198 = smul.addr %s197, 32
        %s199 = smul.addr %s198, 4
        %s200 = scalar_lea.vmem %s0, %s199
        %p201 = pneg %p40
        %p202 = pneg %p37
        %p203 = pneg %p61
        %p204 = pneg %p58
        %p205 = pneg %p82
        %p206 = pneg %p79
        %p207 = pneg %p103
        %p208 = pneg %p100
        %p209 = pneg %p124
        %p210 = pneg %p121
        %p211 = pneg %p150
        %p212 = pneg %p147
        %s213 = sand.u32 %s137, 1
        %s214 = scalar_lea.sflag [#allocation4], %s213
        %s215 = sand.u32 %s137, 1
        %s216 = smul.addr %s215, 256
        %s217 = scalar_lea.vmem [#allocation3], %s216
        %p218 = scmp.lt.s32.totalorder %s19, 1
        %s219 = scalar_select %p218, %s19, 1
        %s220 = smul.addr %s219, 32
        %s221 = smul.addr %s220, 4
        %s222 = scalar_lea.vmem %s0, %s221
        %v224 = vld [vmem:[%s222] sm:$0xf]
        %v225 = vld [vmem:[%s222 + $0x4] sm:$0xf]
        %v226 = vld [vmem:[%s222 + $0x8] sm:$0xf]
        %v227 = vld [vmem:[%s222 + $0xc] sm:$0xf]
        %v228 = vld [vmem:[%s222 + $0x10] sm:$0xf]
        %v229 = vld [vmem:[%s222 + $0x14] sm:$0xf]
        %v230 = vld [vmem:[%s222 + $0x18] sm:$0xf]
        %v231 = vld [vmem:[%s222 + $0x1c] sm:$0xf]
        %v232 = vld [vmem:[%s222 + $0x20] sm:$0xf]
        %v233 = vld [vmem:[%s222 + $0x24] sm:$0xf]
        %v234 = vld [vmem:[%s222 + $0x28] sm:$0xf]
        %v235 = vld [vmem:[%s222 + $0x2c] sm:$0xf]
        %v236 = vld [vmem:[%s222 + $0x30] sm:$0xf]
        %v237 = vld [vmem:[%s222 + $0x34] sm:$0xf]
        %v238 = vld [vmem:[%s222 + $0x38] sm:$0xf]
        %v239 = vld [vmem:[%s222 + $0x3c] sm:$0xf]
        %v240 = vld [vmem:[%s222 + $0x40] sm:$0xf]
        %v241 = vld [vmem:[%s222 + $0x44] sm:$0xf]
        %v242 = vld [vmem:[%s222 + $0x48] sm:$0xf]
        %v243 = vld [vmem:[%s222 + $0x4c] sm:$0xf]
        %v244 = vld [vmem:[%s222 + $0x50] sm:$0xf]
        %v245 = vld [vmem:[%s222 + $0x54] sm:$0xf]
        %v246 = vld [vmem:[%s222 + $0x58] sm:$0xf]
        %v247 = vld [vmem:[%s222 + $0x5c] sm:$0xf]
        %v248 = vld [vmem:[%s222 + $0x60] sm:$0xf]
        %v249 = vld [vmem:[%s222 + $0x64] sm:$0xf]
        %v250 = vld [vmem:[%s222 + $0x68] sm:$0xf]
        %v251 = vld [vmem:[%s222 + $0x6c] sm:$0xf]
        %v252 = vld [vmem:[%s222 + $0x70] sm:$0xf]
        %v253 = vld [vmem:[%s222 + $0x74] sm:$0xf]
        %v254 = vld [vmem:[%s222 + $0x78] sm:$0xf]
        %v255 = vld [vmem:[%s222 + $0x7c] sm:$0xf]
        %v256 = vld [vmem:[%s1] sm:$0xf]
        %v257 = vld [vmem:[%s1 + $0x4] sm:$0xf]
        %v258 = vld [vmem:[%s2] sm:$0x1]
        %v260 = vlaneseq
        %v261 = vshrl.u32 %v260, 7
        %v262 = vsub.s32 0, %v261
        %v263 = vrot.slane %v258, %v262
        %v297 = vunpack.c.l.b16 %v224
        %v298 = vunpack.c.l.b16 %v225
        %v299 = vunpack.c.l.b16 %v226
        %v300 = vunpack.c.l.b16 %v227
        %v301 = vunpack.c.l.b16 %v228
        %v302 = vunpack.c.l.b16 %v229
        %v303 = vunpack.c.l.b16 %v230
        %v304 = vunpack.c.l.b16 %v231
        %v305 = vunpack.c.l.b16 %v232
        %v306 = vunpack.c.l.b16 %v233
        %v307 = vunpack.c.l.b16 %v234
        %v308 = vunpack.c.l.b16 %v235
        %v309 = vunpack.c.l.b16 %v236
        %v310 = vunpack.c.l.b16 %v237
        %v311 = vunpack.c.l.b16 %v238
        %v312 = vunpack.c.l.b16 %v239
        %v313 = vunpack.c.l.b16 %v240
        %v314 = vunpack.c.l.b16 %v241
        %v315 = vunpack.c.l.b16 %v242
        %v316 = vunpack.c.l.b16 %v243
        %v317 = vunpack.c.l.b16 %v244
        %v318 = vunpack.c.l.b16 %v245
        %v319 = vunpack.c.l.b16 %v246
        %v320 = vunpack.c.l.b16 %v247
        %v321 = vunpack.c.l.b16 %v248
        %v322 = vunpack.c.l.b16 %v249
        %v323 = vunpack.c.l.b16 %v250
        %v324 = vunpack.c.l.b16 %v251
        %v325 = vunpack.c.l.b16 %v252
        %v326 = vunpack.c.l.b16 %v253
        %v327 = vunpack.c.l.b16 %v254
        %v328 = vunpack.c.l.b16 %v255
        %v329 = vpack.c.b16 %v298, %v297
        %v330 = vpack.c.b16 %v300, %v299
        %v331 = vpack.c.b16 %v302, %v301
        %v332 = vpack.c.b16 %v304, %v303
        %v333 = vpack.c.b16 %v306, %v305
        %v334 = vpack.c.b16 %v308, %v307
        %v335 = vpack.c.b16 %v310, %v309
        %v336 = vpack.c.b16 %v312, %v311
        %v337 = vpack.c.b16 %v314, %v313
        %v338 = vpack.c.b16 %v316, %v315
        %v339 = vpack.c.b16 %v318, %v317
        %v340 = vpack.c.b16 %v320, %v319
        %v341 = vpack.c.b16 %v322, %v321
        %v342 = vpack.c.b16 %v324, %v323
        %v343 = vpack.c.b16 %v326, %v325
        %v344 = vpack.c.b16 %v328, %v327
        %v347 = vunpack.c.l.b16 %v256
        %v348 = vunpack.c.l.b16 %v257
        %v349 = vpack.c.b16 %v348, %v347
        %vm351 = vcmask 130048
        %v353 = vsel %vm351, %v329, 0
        %v356 = vsel %vm351, %v330, 0
        %v359 = vsel %vm351, %v331, 0
        %v362 = vsel %vm351, %v332, 0
        %v365 = vsel %vm351, %v333, 0
        %v368 = vsel %vm351, %v334, 0
        %v371 = vsel %vm351, %v335, 0
        %v374 = vsel %vm351, %v336, 0
        %v377 = vsel %vm351, %v337, 0
        %v380 = vsel %vm351, %v338, 0
        %v383 = vsel %vm351, %v339, 0
        %v386 = vsel %vm351, %v340, 0
        %v389 = vsel %vm351, %v341, 0
        %v392 = vsel %vm351, %v342, 0
        %v395 = vsel %vm351, %v343, 0
        %v398 = vsel %vm351, %v344, 0
        %400 = vmatprep.subr.bf16.mxu0 0
        %401 = vmatpush1.bf16.msra.mxu0 %v349
        %402 = vmatprep.subr.bf16.mxu0 0
        %403 = vmatpush1.bf16.msra.mxu0 0
        %404 = vmatprep.subr.bf16.mxu0 0
        %405 = vmatpush1.bf16.msra.mxu0 0
        %406 = vmatprep.subr.bf16.mxu0 0
        %407 = vmatpush1.bf16.msra.mxu0 0
        %408 = vmatprep.subr.bf16.mxu0 0
        %409 = vmatpush1.bf16.msra.mxu0 0
        %410 = vmatprep.subr.bf16.mxu0 0
        %411 = vmatpush1.bf16.msra.mxu0 0
        %412 = vmatprep.subr.bf16.mxu0 0
        %413 = vmatpush1.bf16.msra.mxu0 0
        %414 = vmatprep.subr.bf16.mxu0 0
        %415 = vmatpush1.bf16.msra.mxu0 0
        %416 = vmatprep.subr.bf16.mxu0 0
        %417 = vmatpush1.bf16.msra.mxu0 0
        %418 = vmatprep.subr.bf16.mxu0 0
        %419 = vmatpush1.bf16.msra.mxu0 0
        %420 = vmatprep.subr.bf16.mxu0 0
        %421 = vmatpush1.bf16.msra.mxu0 0
        %422 = vmatprep.subr.bf16.mxu0 0
        %423 = vmatpush1.bf16.msra.mxu0 0
        %424 = vmatprep.subr.bf16.mxu0 0
        %425 = vmatpush1.bf16.msra.mxu0 0
        %426 = vmatprep.subr.bf16.mxu0 0
        %427 = vmatpush1.bf16.msra.mxu0 0
        %428 = vmatprep.subr.bf16.mxu0 0
        %429 = vmatpush1.bf16.msra.mxu0 0
        %430 = vmatprep.subr.bf16.mxu0 0
        %431 = vmatpush1.bf16.msra.mxu0 0
        %432 = vmatprep.mubr.bf16.mxu0 0
        %433 = vmatmul.mubr.bf16.gmra.mrb[0].mxu0 %v353
        %v434 = vpop.f32.mrb[0].mxu0
        %v435 = vadd.f32 %v263, %v434
        %v436 = vpop.f32.mrb[0].mxu0
        %v437 = vpop.f32.mrb[0].mxu0
        %v438 = vadd.f32 %v263, %v437
        %v439 = vpop.f32.mrb[0].mxu0
        %440 = vmatprep.mubr.bf16.mxu0 0
        %441 = vmatmul.mubr.bf16.gmra.mrb[0].mxu0 %v356
        %v442 = vpop.f32.mrb[0].mxu0
        %v443 = vadd.f32 %v263, %v442
        %v444 = vpop.f32.mrb[0].mxu0
        %v445 = vpop.f32.mrb[0].mxu0
        %v446 = vadd.f32 %v263, %v445
        %v447 = vpop.f32.mrb[0].mxu0
        %448 = vmatprep.mubr.bf16.mxu0 0
        %449 = vmatmul.mubr.bf16.gmra.mrb[0].mxu0 %v359
        %v450 = vpop.f32.mrb[0].mxu0
        %v451 = vadd.f32 %v263, %v450
        %v452 = vpop.f32.mrb[0].mxu0
        %v453 = vpop.f32.mrb[0].mxu0
        %v454 = vadd.f32 %v263, %v453
        %v455 = vpop.f32.mrb[0].mxu0
        %456 = vmatprep.mubr.bf16.mxu0 0
        %457 = vmatmul.mubr.bf16.gmra.mrb[0].mxu0 %v362
        %v458 = vpop.f32.mrb[0].mxu0
        %v459 = vadd.f32 %v263, %v458
        %v460 = vpop.f32.mrb[0].mxu0
        %v461 = vpop.f32.mrb[0].mxu0
        %v462 = vadd.f32 %v263, %v461
        %v463 = vpop.f32.mrb[0].mxu0
        %464 = vmatprep.mubr.bf16.mxu0 0
        %465 = vmatmul.mubr.bf16.gmra.mrb[0].mxu0 %v365
        %v466 = vpop.f32.mrb[0].mxu0
        %v467 = vadd.f32 %v263, %v466
        %v468 = vpop.f32.mrb[0].mxu0
        %v469 = vpop.f32.mrb[0].mxu0
        %v470 = vadd.f32 %v263, %v469
        %v471 = vpop.f32.mrb[0].mxu0
        %472 = vmatprep.mubr.bf16.mxu0 0
        %473 = vmatmul.mubr.bf16.gmra.mrb[0].mxu0 %v368
        %v474 = vpop.f32.mrb[0].mxu0
        %v475 = vadd.f32 %v263, %v474
        %v476 = vpop.f32.mrb[0].mxu0
        %v477 = vpop.f32.mrb[0].mxu0
        %v478 = vadd.f32 %v263, %v477
        %v479 = vpop.f32.mrb[0].mxu0
        %480 = vmatprep.mubr.bf16.mxu0 0
        %481 = vmatmul.mubr.bf16.gmra.mrb[0].mxu0 %v371
        %v482 = vpop.f32.mrb[0].mxu0
        %v483 = vadd.f32 %v263, %v482
        %v484 = vpop.f32.mrb[0].mxu0
        %v485 = vpop.f32.mrb[0].mxu0
        %v486 = vadd.f32 %v263, %v485
        %v487 = vpop.f32.mrb[0].mxu0
        %488 = vmatprep.mubr.bf16.mxu0 0
        %489 = vmatmul.mubr.bf16.gmra.mrb[0].mxu0 %v374
        %v490 = vpop.f32.mrb[0].mxu0
        %v491 = vadd.f32 %v263, %v490
        %v492 = vpop.f32.mrb[0].mxu0
        %v493 = vpop.f32.mrb[0].mxu0
        %v494 = vadd.f32 %v263, %v493
        %v495 = vpop.f32.mrb[0].mxu0
        %496 = vmatprep.mubr.bf16.mxu0 0
        %497 = vmatmul.mubr.bf16.gmra.mrb[0].mxu0 %v377
        %v498 = vpop.f32.mrb[0].mxu0
        %v499 = vadd.f32 %v263, %v498
        %v500 = vpop.f32.mrb[0].mxu0
        %v501 = vpop.f32.mrb[0].mxu0
        %v502 = vadd.f32 %v263, %v501
        %v503 = vpop.f32.mrb[0].mxu0
        %504 = vmatprep.mubr.bf16.mxu0 0
        %505 = vmatmul.mubr.bf16.gmra.mrb[0].mxu0 %v380
        %v506 = vpop.f32.mrb[0].mxu0
        %v507 = vadd.f32 %v263, %v506
        %v508 = vpop.f32.mrb[0].mxu0
        %v509 = vpop.f32.mrb[0].mxu0
        %v510 = vadd.f32 %v263, %v509
        %v511 = vpop.f32.mrb[0].mxu0
        %512 = vmatprep.mubr.bf16.mxu0 0
        %513 = vmatmul.mubr.bf16.gmra.mrb[0].mxu0 %v383
        %v514 = vpop.f32.mrb[0].mxu0
        %v515 = vadd.f32 %v263, %v514
        %v516 = vpop.f32.mrb[0].mxu0
        %v517 = vpop.f32.mrb[0].mxu0
        %v518 = vadd.f32 %v263, %v517
        %v519 = vpop.f32.mrb[0].mxu0
        %520 = vmatprep.mubr.bf16.mxu0 0
        %521 = vmatmul.mubr.bf16.gmra.mrb[0].mxu0 %v386
        %v522 = vpop.f32.mrb[0].mxu0
        %v523 = vadd.f32 %v263, %v522
        %v524 = vpop.f32.mrb[0].mxu0
        %v525 = vpop.f32.mrb[0].mxu0
        %v526 = vadd.f32 %v263, %v525
        %v527 = vpop.f32.mrb[0].mxu0
        %528 = vmatprep.mubr.bf16.mxu0 0
        %529 = vmatmul.mubr.bf16.gmra.mrb[0].mxu0 %v389
        %v530 = vpop.f32.mrb[0].mxu0
        %v531 = vadd.f32 %v263, %v530
        %v532 = vpop.f32.mrb[0].mxu0
        %v533 = vpop.f32.mrb[0].mxu0
        %v534 = vadd.f32 %v263, %v533
        %v535 = vpop.f32.mrb[0].mxu0
        %536 = vmatprep.mubr.bf16.mxu0 0
        %537 = vmatmul.mubr.bf16.gmra.mrb[0].mxu0 %v392
        %v538 = vpop.f32.mrb[0].mxu0
        %v539 = vadd.f32 %v263, %v538
        %v540 = vpop.f32.mrb[0].mxu0
        %v541 = vpop.f32.mrb[0].mxu0
        %v542 = vadd.f32 %v263, %v541
        %v543 = vpop.f32.mrb[0].mxu0
        %544 = vmatprep.mubr.bf16.mxu0 0
        %545 = vmatmul.mubr.bf16.gmra.mrb[0].mxu0 %v395
        %v546 = vpop.f32.mrb[0].mxu0
        %v547 = vadd.f32 %v263, %v546
        %v548 = vpop.f32.mrb[0].mxu0
        %v549 = vpop.f32.mrb[0].mxu0
        %v550 = vadd.f32 %v263, %v549
        %v551 = vpop.f32.mrb[0].mxu0
        %552 = vmatprep.mubr.bf16.mxu0 0
        %553 = vmatmul.mubr.bf16.gmra.mrb[0].mxu0 %v398
        %v554 = vpop.f32.mrb[0].mxu0
        %v555 = vadd.f32 %v263, %v554
        %v556 = vpop.f32.mrb[0].mxu0
        %v557 = vpop.f32.mrb[0].mxu0
        %v558 = vadd.f32 %v263, %v557
        %v559 = vpop.f32.mrb[0].mxu0
        %560 = vdwg.mxu0
        %v561 = vmax.f32 %v435, 0.0
        %v562 = vmax.f32 %v438, 0.0
        %v563 = vmax.f32 %v443, 0.0
        %v564 = vmax.f32 %v446, 0.0
        %v565 = vmax.f32 %v451, 0.0
        %v566 = vmax.f32 %v454, 0.0
        %v567 = vmax.f32 %v459, 0.0
        %v568 = vmax.f32 %v462, 0.0
        %v569 = vmax.f32 %v467, 0.0
        %v570 = vmax.f32 %v470, 0.0
        %v571 = vmax.f32 %v475, 0.0
        %v572 = vmax.f32 %v478, 0.0
        %v573 = vmax.f32 %v483, 0.0
        %v574 = vmax.f32 %v486, 0.0
        %v575 = vmax.f32 %v491, 0.0
        %v576 = vmax.f32 %v494, 0.0
        %v577 = vmax.f32 %v499, 0.0
        %v578 = vmax.f32 %v502, 0.0
        %v579 = vmax.f32 %v507, 0.0
        %v580 = vmax.f32 %v510, 0.0
        %v581 = vmax.f32 %v515, 0.0
        %v582 = vmax.f32 %v518, 0.0
        %v583 = vmax.f32 %v523, 0.0
        %v584 = vmax.f32 %v526, 0.0
        %v585 = vmax.f32 %v531, 0.0
        %v586 = vmax.f32 %v534, 0.0
        %v587 = vmax.f32 %v539, 0.0
        %v588 = vmax.f32 %v542, 0.0
        %v589 = vmax.f32 %v547, 0.0
        %v590 = vmax.f32 %v550, 0.0
        %v591 = vmax.f32 %v555, 0.0
        %v592 = vmax.f32 %v558, 0.0
        %593 = vst.msk [vmem:[#allocation2] sm:$0xff] %vm351, 0.0
        %594 = vst.msk [vmem:[#allocation2 + $0x8] sm:$0xff] %vm351, 0.0
        %vm595 = vcmask 123904
        %596 = vst.msk [vmem:[#allocation2 + $0x10] sm:$0x3] %vm595, 0.0
        %597 = vst.msk [vmem:[#allocation2 + $0x18] sm:$0xff] %vm351, 0.0
        %598 = vst.msk [vmem:[#allocation2 + $0x20] sm:$0xff] %vm351, 0.0
        %599 = vst.msk [vmem:[#allocation2 + $0x28] sm:$0x3] %vm595, 0.0
        %600 = vst.msk [vmem:[#allocation2 + $0x30] sm:$0xff] %vm351, 0.0
        %601 = vst.msk [vmem:[#allocation2 + $0x38] sm:$0xff] %vm351, 0.0
        %602 = vst.msk [vmem:[#allocation2 + $0x40] sm:$0x3] %vm595, 0.0
        %603 = vst.msk [vmem:[#allocation2 + $0x48] sm:$0xff] %vm351, 0.0
        %604 = vst.msk [vmem:[#allocation2 + $0x50] sm:$0xff] %vm351, 0.0
        %605 = vst.msk [vmem:[#allocation2 + $0x58] sm:$0x3] %vm595, 0.0
        %606 = vst.msk [vmem:[#allocation2 + $0x60] sm:$0xff] %vm351, 0.0
        %607 = vst.msk [vmem:[#allocation2 + $0x68] sm:$0xff] %vm351, 0.0
        %608 = vst.msk [vmem:[#allocation2 + $0x70] sm:$0x3] %vm595, 0.0
        %609 = vst.msk [vmem:[#allocation2 + $0x78] sm:$0xff] %vm351, 0.0
        %610 = vst.msk [vmem:[#allocation2 + $0x80] sm:$0xff] %vm351, 0.0
        %611 = vst.msk [vmem:[#allocation2 + $0x88] sm:$0x3] %vm595, 0.0
        %612 = vst.msk [vmem:[#allocation2 + $0x90] sm:$0xff] %vm351, 0.0
        %613 = vst.msk [vmem:[#allocation2 + $0x98] sm:$0xff] %vm351, 0.0
        %614 = vst.msk [vmem:[#allocation2 + $0xa0] sm:$0x3] %vm595, 0.0
        %615 = vst.msk [vmem:[#allocation2 + $0xa8] sm:$0xff] %vm351, 0.0
        %616 = vst.msk [vmem:[#allocation2 + $0xb0] sm:$0xff] %vm351, 0.0
        %617 = vst.msk [vmem:[#allocation2 + $0xb8] sm:$0x3] %vm595, 0.0
        %618 = vst.msk [vmem:[#allocation2 + $0xc0] sm:$0xff] %vm351, 0.0
        %619 = vst.msk [vmem:[#allocation2 + $0xc8] sm:$0xff] %vm351, 0.0
        %620 = vst.msk [vmem:[#allocation2 + $0xd0] sm:$0x3] %vm595, 0.0
        %621 = vst.msk [vmem:[#allocation2 + $0xd8] sm:$0xff] %vm351, 0.0
        %622 = vst.msk [vmem:[#allocation2 + $0xe0] sm:$0xff] %vm351, 0.0
        %623 = vst.msk [vmem:[#allocation2 + $0xe8] sm:$0x3] %vm595, 0.0
        %624 = vst.msk [vmem:[#allocation2 + $0xf0] sm:$0xff] %vm351, 0.0
        %625 = vst.msk [vmem:[#allocation2 + $0xf8] sm:$0xff] %vm351, 0.0
        %626 = vst.msk [vmem:[#allocation2 + $0x100] sm:$0x3] %vm595, 0.0
        %627 = vst.msk [vmem:[#allocation2 + $0x108] sm:$0xff] %vm351, 0.0
        %628 = vst.msk [vmem:[#allocation2 + $0x110] sm:$0xff] %vm351, 0.0
        %629 = vst.msk [vmem:[#allocation2 + $0x118] sm:$0x3] %vm595, 0.0
        %630 = vst.msk [vmem:[#allocation2 + $0x120] sm:$0xff] %vm351, 0.0
        %631 = vst.msk [vmem:[#allocation2 + $0x128] sm:$0xff] %vm351, 0.0
        %632 = vst.msk [vmem:[#allocation2 + $0x130] sm:$0x3] %vm595, 0.0
        %633 = vst.msk [vmem:[#allocation2 + $0x138] sm:$0xff] %vm351, 0.0
        %634 = vst.msk [vmem:[#allocation2 + $0x140] sm:$0xff] %vm351, 0.0
        %635 = vst.msk [vmem:[#allocation2 + $0x148] sm:$0x3] %vm595, 0.0
        %636 = vst.msk [vmem:[#allocation2 + $0x150] sm:$0xff] %vm351, 0.0
        %637 = vst.msk [vmem:[#allocation2 + $0x158] sm:$0xff] %vm351, 0.0
        %638 = vst.msk [vmem:[#allocation2 + $0x160] sm:$0x3] %vm595, 0.0
        %639 = vst.msk [vmem:[#allocation2 + $0x168] sm:$0xff] %vm351, 0.0
        %640 = vst.msk [vmem:[#allocation2 + $0x170] sm:$0xff] %vm351, 0.0
        %641 = vst.msk [vmem:[#allocation2 + $0x178] sm:$0x3] %vm595, 0.0
        %642 = vst.msk [vmem:[#allocation2 + $0x180] sm:$0xff] %vm351, 0.0
        %643 = vst.msk [vmem:[#allocation2 + $0x188] sm:$0xff] %vm351, 0.0
        %644 = vst.msk [vmem:[#allocation2 + $0x190] sm:$0x3] %vm595, 0.0
        %645 = vst.msk [vmem:[#allocation2 + $0x198] sm:$0xff] %vm351, 0.0
        %646 = vst.msk [vmem:[#allocation2 + $0x1a0] sm:$0xff] %vm351, 0.0
        %647 = vst.msk [vmem:[#allocation2 + $0x1a8] sm:$0x3] %vm595, 0.0
        %s648 = scalar_lea.vmem [#allocation2], 24
        %649 = vst.msk [vmem:[%s648 + $0x1] sm:$0xff] %vm351, %v561
        %650 = vst.msk [vmem:[%s648 + $0x9] sm:$0xff] %vm351, %v562
        %651 = vst.msk [vmem:[%s648 + $0x19] sm:$0xff] %vm351, %v563
        %652 = vst.msk [vmem:[%s648 + $0x21] sm:$0xff] %vm351, %v564
        %653 = vst.msk [vmem:[%s648 + $0x31] sm:$0xff] %vm351, %v565
        %654 = vst.msk [vmem:[%s648 + $0x39] sm:$0xff] %vm351, %v566
        %655 = vst.msk [vmem:[%s648 + $0x49] sm:$0xff] %vm351, %v567
        %656 = vst.msk [vmem:[%s648 + $0x51] sm:$0xff] %vm351, %v568
        %657 = vst.msk [vmem:[%s648 + $0x61] sm:$0xff] %vm351, %v569
        %658 = vst.msk [vmem:[%s648 + $0x69] sm:$0xff] %vm351, %v570
        %659 = vst.msk [vmem:[%s648 + $0x79] sm:$0xff] %vm351, %v571
        %660 = vst.msk [vmem:[%s648 + $0x81] sm:$0xff] %vm351, %v572
        %661 = vst.msk [vmem:[%s648 + $0x91] sm:$0xff] %vm351, %v573
        %662 = vst.msk [vmem:[%s648 + $0x99] sm:$0xff] %vm351, %v574
        %663 = vst.msk [vmem:[%s648 + $0xa9] sm:$0xff] %vm351, %v575
        %664 = vst.msk [vmem:[%s648 + $0xb1] sm:$0xff] %vm351, %v576
        %665 = vst.msk [vmem:[%s648 + $0xc1] sm:$0xff] %vm351, %v577
        %666 = vst.msk [vmem:[%s648 + $0xc9] sm:$0xff] %vm351, %v578
        %667 = vst.msk [vmem:[%s648 + $0xd9] sm:$0xff] %vm351, %v579
        %668 = vst.msk [vmem:[%s648 + $0xe1] sm:$0xff] %vm351, %v580
        %669 = vst.msk [vmem:[%s648 + $0xf1] sm:$0xff] %vm351, %v581
        %670 = vst.msk [vmem:[%s648 + $0xf9] sm:$0xff] %vm351, %v582
        %671 = vst.msk [vmem:[%s648 + $0x109] sm:$0xff] %vm351, %v583
        %672 = vst.msk [vmem:[%s648 + $0x111] sm:$0xff] %vm351, %v584
        %673 = vst.msk [vmem:[%s648 + $0x121] sm:$0xff] %vm351, %v585
        %674 = vst.msk [vmem:[%s648 + $0x129] sm:$0xff] %vm351, %v586
        %675 = vst.msk [vmem:[%s648 + $0x139] sm:$0xff] %vm351, %v587
        %676 = vst.msk [vmem:[%s648 + $0x141] sm:$0xff] %vm351, %v588
        %677 = vst.msk [vmem:[%s648 + $0x151] sm:$0xff] %vm351, %v589
        %678 = vst.msk [vmem:[%s648 + $0x159] sm:$0xff] %vm351, %v590
        %679 = vst.msk [vmem:[%s648 + $0x169] sm:$0xff] %vm351, %v591
        %680 = vst.msk [vmem:[%s648 + $0x171] sm:$0xff] %vm351, %v592
        %v681 = vld [vmem:[%s3] sm:$0xff]
        %v682 = vld [vmem:[%s3 + $0x8] sm:$0x1]
        %v683 = vld [vmem:[#allocation2] sm:$0xff]
        %v684 = vld [vmem:[#allocation2 + $0x8] sm:$0xff]
        %v685 = vld [vmem:[#allocation2 + $0x18] sm:$0xff]
        %v686 = vld [vmem:[#allocation2 + $0x20] sm:$0xff]
        %v687 = vld [vmem:[#allocation2 + $0x30] sm:$0xff]
        %v688 = vld [vmem:[#allocation2 + $0x38] sm:$0xff]
        %v689 = vld [vmem:[#allocation2 + $0x48] sm:$0xff]
        %v690 = vld [vmem:[#allocation2 + $0x50] sm:$0xff]
        %v691 = vld [vmem:[#allocation2 + $0x60] sm:$0xff]
        %v692 = vld [vmem:[#allocation2 + $0x68] sm:$0xff]
        %v693 = vld [vmem:[#allocation2 + $0x78] sm:$0xff]
        %v694 = vld [vmem:[#allocation2 + $0x80] sm:$0xff]
        %v695 = vld [vmem:[#allocation2 + $0x90] sm:$0xff]
        %v696 = vld [vmem:[#allocation2 + $0x98] sm:$0xff]
        %v697 = vld [vmem:[#allocation2 + $0xa8] sm:$0xff]
        %v698 = vld [vmem:[#allocation2 + $0xb0] sm:$0xff]
        %v699 = vld [vmem:[#allocation2 + $0xc0] sm:$0xff]
        %v700 = vld [vmem:[#allocation2 + $0xc8] sm:$0xff]
        %v701 = vld [vmem:[#allocation2 + $0xd8] sm:$0xff]
        %v702 = vld [vmem:[#allocation2 + $0xe0] sm:$0xff]
        %v703 = vld [vmem:[#allocation2 + $0xf0] sm:$0xff]
        %v704 = vld [vmem:[#allocation2 + $0xf8] sm:$0xff]
        %v705 = vld [vmem:[#allocation2 + $0x108] sm:$0xff]
        %v706 = vld [vmem:[#allocation2 + $0x110] sm:$0xff]
        %v707 = vld [vmem:[#allocation2 + $0x120] sm:$0xff]
        %v708 = vld [vmem:[#allocation2 + $0x128] sm:$0xff]
        %v709 = vld [vmem:[#allocation2 + $0x138] sm:$0xff]
        %v710 = vld [vmem:[#allocation2 + $0x140] sm:$0xff]
        %v711 = vld [vmem:[#allocation2 + $0x150] sm:$0xff]
        %v712 = vld [vmem:[#allocation2 + $0x158] sm:$0xff]
        %v713 = vld [vmem:[#allocation2 + $0x168] sm:$0xff]
        %v714 = vld [vmem:[#allocation2 + $0x170] sm:$0xff]
        %v715 = vlaneseq
        %v716 = vshrl.u32 %v715, 7
        %v717 = vsub.s32 0, %v716
        %v718 = vrot.slane %v681, %v717
        %v719 = vmul.f32 %v683, %v718
        %v720 = vmul.f32 %v684, %v718
        %v721 = vmul.f32 %v685, %v718
        %v722 = vmul.f32 %v686, %v718
        %v723 = vmul.f32 %v687, %v718
        %v724 = vmul.f32 %v688, %v718
        %v725 = vmul.f32 %v689, %v718
        %v726 = vmul.f32 %v690, %v718
        %v727 = vmul.f32 %v691, %v718
        %v728 = vmul.f32 %v692, %v718
        %v729 = vmul.f32 %v693, %v718
        %v730 = vmul.f32 %v694, %v718
        %v731 = vmul.f32 %v695, %v718
        %v732 = vmul.f32 %v696, %v718
        %v733 = vmul.f32 %v697, %v718
        %v734 = vmul.f32 %v698, %v718
        %v735 = vmul.f32 %v699, %v718
        %v736 = vmul.f32 %v700, %v718
        %v737 = vmul.f32 %v701, %v718
        %v738 = vmul.f32 %v702, %v718
        %v739 = vmul.f32 %v703, %v718
        %v740 = vmul.f32 %v704, %v718
        %v741 = vmul.f32 %v705, %v718
        %v742 = vmul.f32 %v706, %v718
        %v743 = vmul.f32 %v707, %v718
        %v744 = vmul.f32 %v708, %v718
        %v745 = vmul.f32 %v709, %v718
        %v746 = vmul.f32 %v710, %v718
        %v747 = vmul.f32 %v711, %v718
        %v748 = vmul.f32 %v712, %v718
        %v749 = vmul.f32 %v713, %v718
        %v750 = vmul.f32 %v714, %v718
        %v751 = vld [vmem:[#allocation2 + $0x1] sm:$0xff]
        %v752 = vld [vmem:[#allocation2 + $0x9] sm:$0xff]
        %v753 = vld [vmem:[#allocation2 + $0x19] sm:$0xff]
        %v754 = vld [vmem:[#allocation2 + $0x21] sm:$0xff]
        %v755 = vld [vmem:[#allocation2 + $0x31] sm:$0xff]
        %v756 = vld [vmem:[#allocation2 + $0x39] sm:$0xff]
        %v757 = vld [vmem:[#allocation2 + $0x49] sm:$0xff]
        %v758 = vld [vmem:[#allocation2 + $0x51] sm:$0xff]
        %v759 = vld [vmem:[#allocation2 + $0x61] sm:$0xff]
        %v760 = vld [vmem:[#allocation2 + $0x69] sm:$0xff]
        %v761 = vld [vmem:[#allocation2 + $0x79] sm:$0xff]
        %v762 = vld [vmem:[#allocation2 + $0x81] sm:$0xff]
        %v763 = vld [vmem:[#allocation2 + $0x91] sm:$0xff]
        %v764 = vld [vmem:[#allocation2 + $0x99] sm:$0xff]
        %v765 = vld [vmem:[#allocation2 + $0xa9] sm:$0xff]
        %v766 = vld [vmem:[#allocation2 + $0xb1] sm:$0xff]
        %v767 = vld [vmem:[#allocation2 + $0xc1] sm:$0xff]
        %v768 = vld [vmem:[#allocation2 + $0xc9] sm:$0xff]
        %v769 = vld [vmem:[#allocation2 + $0xd9] sm:$0xff]
        %v770 = vld [vmem:[#allocation2 + $0xe1] sm:$0xff]
        %v771 = vld [vmem:[#allocation2 + $0xf1] sm:$0xff]
        %v772 = vld [vmem:[#allocation2 + $0xf9] sm:$0xff]
        %v773 = vld [vmem:[#allocation2 + $0x109] sm:$0xff]
        %v774 = vld [vmem:[#allocation2 + $0x111] sm:$0xff]
        %v775 = vld [vmem:[#allocation2 + $0x121] sm:$0xff]
        %v776 = vld [vmem:[#allocation2 + $0x129] sm:$0xff]
        %v777 = vld [vmem:[#allocation2 + $0x139] sm:$0xff]
        %v778 = vld [vmem:[#allocation2 + $0x141] sm:$0xff]
        %v779 = vld [vmem:[#allocation2 + $0x151] sm:$0xff]
        %v780 = vld [vmem:[#allocation2 + $0x159] sm:$0xff]
        %v781 = vld [vmem:[#allocation2 + $0x169] sm:$0xff]
        %v782 = vld [vmem:[#allocation2 + $0x171] sm:$0xff]
        %v783 = vlaneseq
        %v784 = vshrl.u32 %v783, 7
        %v785 = vsub.s32 1, %v784
        %v786 = vrot.slane %v681, %v785
        %v787 = vmul.f32 %v751, %v786
        %v788 = vmul.f32 %v752, %v786
        %v789 = vmul.f32 %v753, %v786
        %v790 = vmul.f32 %v754, %v786
        %v791 = vmul.f32 %v755, %v786
        %v792 = vmul.f32 %v756, %v786
        %v793 = vmul.f32 %v757, %v786
        %v794 = vmul.f32 %v758, %v786
        %v795 = vmul.f32 %v759, %v786
        %v796 = vmul.f32 %v760, %v786
        %v797 = vmul.f32 %v761, %v786
        %v798 = vmul.f32 %v762, %v786
        %v799 = vmul.f32 %v763, %v786
        %v800 = vmul.f32 %v764, %v786
        %v801 = vmul.f32 %v765, %v786
        %v802 = vmul.f32 %v766, %v786
        %v803 = vmul.f32 %v767, %v786
        %v804 = vmul.f32 %v768, %v786
        %v805 = vmul.f32 %v769, %v786
        %v806 = vmul.f32 %v770, %v786
        %v807 = vmul.f32 %v771, %v786
        %v808 = vmul.f32 %v772, %v786
        %v809 = vmul.f32 %v773, %v786
        %v810 = vmul.f32 %v774, %v786
        %v811 = vmul.f32 %v775, %v786
        %v812 = vmul.f32 %v776, %v786
        %v813 = vmul.f32 %v777, %v786
        %v814 = vmul.f32 %v778, %v786
        %v815 = vmul.f32 %v779, %v786
        %v816 = vmul.f32 %v780, %v786
        %v817 = vmul.f32 %v781, %v786
        %v818 = vmul.f32 %v782, %v786
        %v819 = vadd.f32 %v719, %v787
        %v820 = vadd.f32 %v720, %v788
        %v821 = vadd.f32 %v721, %v789
        %v822 = vadd.f32 %v722, %v790
        %v823 = vadd.f32 %v723, %v791
        %v824 = vadd.f32 %v724, %v792
        %v825 = vadd.f32 %v725, %v793
        %v826 = vadd.f32 %v726, %v794
        %v827 = vadd.f32 %v727, %v795
        %v828 = vadd.f32 %v728, %v796
        %v829 = vadd.f32 %v729, %v797
        %v830 = vadd.f32 %v730, %v798
        %v831 = vadd.f32 %v731, %v799
        %v832 = vadd.f32 %v732, %v800
        %v833 = vadd.f32 %v733, %v801
        %v834 = vadd.f32 %v734, %v802
        %v835 = vadd.f32 %v735, %v803
        %v836 = vadd.f32 %v736, %v804
        %v837 = vadd.f32 %v737, %v805
        %v838 = vadd.f32 %v738, %v806
        %v839 = vadd.f32 %v739, %v807
        %v840 = vadd.f32 %v740, %v808
        %v841 = vadd.f32 %v741, %v809
        %v842 = vadd.f32 %v742, %v810
        %v843 = vadd.f32 %v743, %v811
        %v844 = vadd.f32 %v744, %v812
        %v845 = vadd.f32 %v745, %v813
        %v846 = vadd.f32 %v746, %v814
        %v847 = vadd.f32 %v747, %v815
        %v848 = vadd.f32 %v748, %v816
        %v849 = vadd.f32 %v749, %v817
        %v850 = vadd.f32 %v750, %v818
        %v851 = vld [vmem:[#allocation2 + $0x2] sm:$0xff]
        %v852 = vld [vmem:[#allocation2 + $0xa] sm:$0xff]
        %v853 = vld [vmem:[#allocation2 + $0x1a] sm:$0xff]
        %v854 = vld [vmem:[#allocation2 + $0x22] sm:$0xff]
        %v855 = vld [vmem:[#allocation2 + $0x32] sm:$0xff]
        %v856 = vld [vmem:[#allocation2 + $0x3a] sm:$0xff]
        %v857 = vld [vmem:[#allocation2 + $0x4a] sm:$0xff]
        %v858 = vld [vmem:[#allocation2 + $0x52] sm:$0xff]
        %v859 = vld [vmem:[#allocation2 + $0x62] sm:$0xff]
        %v860 = vld [vmem:[#allocation2 + $0x6a] sm:$0xff]
        %v861 = vld [vmem:[#allocation2 + $0x7a] sm:$0xff]
        %v862 = vld [vmem:[#allocation2 + $0x82] sm:$0xff]
        %v863 = vld [vmem:[#allocation2 + $0x92] sm:$0xff]
        %v864 = vld [vmem:[#allocation2 + $0x9a] sm:$0xff]
        %v865 = vld [vmem:[#allocation2 + $0xaa] sm:$0xff]
        %v866 = vld [vmem:[#allocation2 + $0xb2] sm:$0xff]
        %v867 = vld [vmem:[#allocation2 + $0xc2] sm:$0xff]
        %v868 = vld [vmem:[#allocation2 + $0xca] sm:$0xff]
        %v869 = vld [vmem:[#allocation2 + $0xda] sm:$0xff]
        %v870 = vld [vmem:[#allocation2 + $0xe2] sm:$0xff]
        %v871 = vld [vmem:[#allocation2 + $0xf2] sm:$0xff]
        %v872 = vld [vmem:[#allocation2 + $0xfa] sm:$0xff]
        %v873 = vld [vmem:[#allocation2 + $0x10a] sm:$0xff]
        %v874 = vld [vmem:[#allocation2 + $0x112] sm:$0xff]
        %v875 = vld [vmem:[#allocation2 + $0x122] sm:$0xff]
        %v876 = vld [vmem:[#allocation2 + $0x12a] sm:$0xff]
        %v877 = vld [vmem:[#allocation2 + $0x13a] sm:$0xff]
        %v878 = vld [vmem:[#allocation2 + $0x142] sm:$0xff]
        %v879 = vld [vmem:[#allocation2 + $0x152] sm:$0xff]
        %v880 = vld [vmem:[#allocation2 + $0x15a] sm:$0xff]
        %v881 = vld [vmem:[#allocation2 + $0x16a] sm:$0xff]
        %v882 = vld [vmem:[#allocation2 + $0x172] sm:$0xff]
        %v883 = vlaneseq
        %v884 = vshrl.u32 %v883, 7
        %v885 = vsub.s32 2, %v884
        %v886 = vrot.slane %v681, %v885
        %v887 = vmul.f32 %v851, %v886
        %v888 = vmul.f32 %v852, %v886
        %v889 = vmul.f32 %v853, %v886
        %v890 = vmul.f32 %v854, %v886
        %v891 = vmul.f32 %v855, %v886
        %v892 = vmul.f32 %v856, %v886
        %v893 = vmul.f32 %v857, %v886
        %v894 = vmul.f32 %v858, %v886
        %v895 = vmul.f32 %v859, %v886
        %v896 = vmul.f32 %v860, %v886
        %v897 = vmul.f32 %v861, %v886
        %v898 = vmul.f32 %v862, %v886
        %v899 = vmul.f32 %v863, %v886
        %v900 = vmul.f32 %v864, %v886
        %v901 = vmul.f32 %v865, %v886
        %v902 = vmul.f32 %v866, %v886
        %v903 = vmul.f32 %v867, %v886
        %v904 = vmul.f32 %v868, %v886
        %v905 = vmul.f32 %v869, %v886
        %v906 = vmul.f32 %v870, %v886
        %v907 = vmul.f32 %v871, %v886
        %v908 = vmul.f32 %v872, %v886
        %v909 = vmul.f32 %v873, %v886
        %v910 = vmul.f32 %v874, %v886
        %v911 = vmul.f32 %v875, %v886
        %v912 = vmul.f32 %v876, %v886
        %v913 = vmul.f32 %v877, %v886
        %v914 = vmul.f32 %v878, %v886
        %v915 = vmul.f32 %v879, %v886
        %v916 = vmul.f32 %v880, %v886
        %v917 = vmul.f32 %v881, %v886
        %v918 = vmul.f32 %v882, %v886
        %v919 = vadd.f32 %v819, %v887
        %v920 = vadd.f32 %v820, %v888
        %v921 = vadd.f32 %v821, %v889
        %v922 = vadd.f32 %v822, %v890
        %v923 = vadd.f32 %v823, %v891
        %v924 = vadd.f32 %v824, %v892
        %v925 = vadd.f32 %v825, %v893
        %v926 = vadd.f32 %v826, %v894
        %v927 = vadd.f32 %v827, %v895
        %v928 = vadd.f32 %v828, %v896
        %v929 = vadd.f32 %v829, %v897
        %v930 = vadd.f32 %v830, %v898
        %v931 = vadd.f32 %v831, %v899
        %v932 = vadd.f32 %v832, %v900
        %v933 = vadd.f32 %v833, %v901
        %v934 = vadd.f32 %v834, %v902
        %v935 = vadd.f32 %v835, %v903
        %v936 = vadd.f32 %v836, %v904
        %v937 = vadd.f32 %v837, %v905
        %v938 = vadd.f32 %v838, %v906
        %v939 = vadd.f32 %v839, %v907
        %v940 = vadd.f32 %v840, %v908
        %v941 = vadd.f32 %v841, %v909
        %v942 = vadd.f32 %v842, %v910
        %v943 = vadd.f32 %v843, %v911
        %v944 = vadd.f32 %v844, %v912
        %v945 = vadd.f32 %v845, %v913
        %v946 = vadd.f32 %v846, %v914
        %v947 = vadd.f32 %v847, %v915
        %v948 = vadd.f32 %v848, %v916
        %v949 = vadd.f32 %v849, %v917
        %v950 = vadd.f32 %v850, %v918
        %v951 = vld [vmem:[%s648] sm:$0xff]
        %v952 = vld [vmem:[%s648 + $0x8] sm:$0xff]
        %v953 = vld [vmem:[%s648 + $0x18] sm:$0xff]
        %v954 = vld [vmem:[%s648 + $0x20] sm:$0xff]
        %v955 = vld [vmem:[%s648 + $0x30] sm:$0xff]
        %v956 = vld [vmem:[%s648 + $0x38] sm:$0xff]
        %v957 = vld [vmem:[%s648 + $0x48] sm:$0xff]
        %v958 = vld [vmem:[%s648 + $0x50] sm:$0xff]
        %v959 = vld [vmem:[%s648 + $0x60] sm:$0xff]
        %v960 = vld [vmem:[%s648 + $0x68] sm:$0xff]
        %v961 = vld [vmem:[%s648 + $0x78] sm:$0xff]
        %v962 = vld [vmem:[%s648 + $0x80] sm:$0xff]
        %v963 = vld [vmem:[%s648 + $0x90] sm:$0xff]
        %v964 = vld [vmem:[%s648 + $0x98] sm:$0xff]
        %v965 = vld [vmem:[%s648 + $0xa8] sm:$0xff]
        %v966 = vld [vmem:[%s648 + $0xb0] sm:$0xff]
        %v967 = vld [vmem:[%s648 + $0xc0] sm:$0xff]
        %v968 = vld [vmem:[%s648 + $0xc8] sm:$0xff]
        %v969 = vld [vmem:[%s648 + $0xd8] sm:$0xff]
        %v970 = vld [vmem:[%s648 + $0xe0] sm:$0xff]
        %v971 = vld [vmem:[%s648 + $0xf0] sm:$0xff]
        %v972 = vld [vmem:[%s648 + $0xf8] sm:$0xff]
        %v973 = vld [vmem:[%s648 + $0x108] sm:$0xff]
        %v974 = vld [vmem:[%s648 + $0x110] sm:$0xff]
        %v975 = vld [vmem:[%s648 + $0x120] sm:$0xff]
        %v976 = vld [vmem:[%s648 + $0x128] sm:$0xff]
        %v977 = vld [vmem:[%s648 + $0x138] sm:$0xff]
        %v978 = vld [vmem:[%s648 + $0x140] sm:$0xff]
        %v979 = vld [vmem:[%s648 + $0x150] sm:$0xff]
        %v980 = vld [vmem:[%s648 + $0x158] sm:$0xff]
        %v981 = vld [vmem:[%s648 + $0x168] sm:$0xff]
        %v982 = vld [vmem:[%s648 + $0x170] sm:$0xff]
        %v983 = vlaneseq
        %v984 = vshrl.u32 %v983, 7
        %v985 = vsub.s32 3, %v984
        %v986 = vrot.slane %v681, %v985
        %v987 = vmul.f32 %v951, %v986
        %v988 = vmul.f32 %v952, %v986
        %v989 = vmul.f32 %v953, %v986
        %v990 = vmul.f32 %v954, %v986
        %v991 = vmul.f32 %v955, %v986
        %v992 = vmul.f32 %v956, %v986
        %v993 = vmul.f32 %v957, %v986
        %v994 = vmul.f32 %v958, %v986
        %v995 = vmul.f32 %v959, %v986
        %v996 = vmul.f32 %v960, %v986
        %v997 = vmul.f32 %v961, %v986
        %v998 = vmul.f32 %v962, %v986
        %v999 = vmul.f32 %v963, %v986
        %v1000 = vmul.f32 %v964, %v986
        %v1001 = vmul.f32 %v965, %v986
        %v1002 = vmul.f32 %v966, %v986
        %v1003 = vmul.f32 %v967, %v986
        %v1004 = vmul.f32 %v968, %v986
        %v1005 = vmul.f32 %v969, %v986
        %v1006 = vmul.f32 %v970, %v986
        %v1007 = vmul.f32 %v971, %v986
        %v1008 = vmul.f32 %v972, %v986
        %v1009 = vmul.f32 %v973, %v986
        %v1010 = vmul.f32 %v974, %v986
        %v1011 = vmul.f32 %v975, %v986
        %v1012 = vmul.f32 %v976, %v986
        %v1013 = vmul.f32 %v977, %v986
        %v1014 = vmul.f32 %v978, %v986
        %v1015 = vmul.f32 %v979, %v986
        %v1016 = vmul.f32 %v980, %v986
        %v1017 = vmul.f32 %v981, %v986
        %v1018 = vmul.f32 %v982, %v986
        %v1019 = vadd.f32 %v919, %v987
        %v1020 = vadd.f32 %v920, %v988
        %v1021 = vadd.f32 %v921, %v989
        %v1022 = vadd.f32 %v922, %v990
        %v1023 = vadd.f32 %v923, %v991
        %v1024 = vadd.f32 %v924, %v992
        %v1025 = vadd.f32 %v925, %v993
        %v1026 = vadd.f32 %v926, %v994
        %v1027 = vadd.f32 %v927, %v995
        %v1028 = vadd.f32 %v928, %v996
        %v1029 = vadd.f32 %v929, %v997
        %v1030 = vadd.f32 %v930, %v998
        %v1031 = vadd.f32 %v931, %v999
        %v1032 = vadd.f32 %v932, %v1000
        %v1033 = vadd.f32 %v933, %v1001
        %v1034 = vadd.f32 %v934, %v1002
        %v1035 = vadd.f32 %v935, %v1003
        %v1036 = vadd.f32 %v936, %v1004
        %v1037 = vadd.f32 %v937, %v1005
        %v1038 = vadd.f32 %v938, %v1006
        %v1039 = vadd.f32 %v939, %v1007
        %v1040 = vadd.f32 %v940, %v1008
        %v1041 = vadd.f32 %v941, %v1009
        %v1042 = vadd.f32 %v942, %v1010
        %v1043 = vadd.f32 %v943, %v1011
        %v1044 = vadd.f32 %v944, %v1012
        %v1045 = vadd.f32 %v945, %v1013
        %v1046 = vadd.f32 %v946, %v1014
        %v1047 = vadd.f32 %v947, %v1015
        %v1048 = vadd.f32 %v948, %v1016
        %v1049 = vadd.f32 %v949, %v1017
        %v1050 = vadd.f32 %v950, %v1018
        %v1051 = vld [vmem:[%s648 + $0x1] sm:$0xff]
        %v1052 = vld [vmem:[%s648 + $0x9] sm:$0xff]
        %v1053 = vld [vmem:[%s648 + $0x19] sm:$0xff]
        %v1054 = vld [vmem:[%s648 + $0x21] sm:$0xff]
        %v1055 = vld [vmem:[%s648 + $0x31] sm:$0xff]
        %v1056 = vld [vmem:[%s648 + $0x39] sm:$0xff]
        %v1057 = vld [vmem:[%s648 + $0x49] sm:$0xff]
        %v1058 = vld [vmem:[%s648 + $0x51] sm:$0xff]
        %v1059 = vld [vmem:[%s648 + $0x61] sm:$0xff]
        %v1060 = vld [vmem:[%s648 + $0x69] sm:$0xff]
        %v1061 = vld [vmem:[%s648 + $0x79] sm:$0xff]
        %v1062 = vld [vmem:[%s648 + $0x81] sm:$0xff]
        %v1063 = vld [vmem:[%s648 + $0x91] sm:$0xff]
        %v1064 = vld [vmem:[%s648 + $0x99] sm:$0xff]
        %v1065 = vld [vmem:[%s648 + $0xa9] sm:$0xff]
        %v1066 = vld [vmem:[%s648 + $0xb1] sm:$0xff]
        %v1067 = vld [vmem:[%s648 + $0xc1] sm:$0xff]
        %v1068 = vld [vmem:[%s648 + $0xc9] sm:$0xff]
        %v1069 = vld [vmem:[%s648 + $0xd9] sm:$0xff]
        %v1070 = vld [vmem:[%s648 + $0xe1] sm:$0xff]
        %v1071 = vld [vmem:[%s648 + $0xf1] sm:$0xff]
        %v1072 = vld [vmem:[%s648 + $0xf9] sm:$0xff]
        %v1073 = vld [vmem:[%s648 + $0x109] sm:$0xff]
        %v1074 = vld [vmem:[%s648 + $0x111] sm:$0xff]
        %v1075 = vld [vmem:[%s648 + $0x121] sm:$0xff]
        %v1076 = vld [vmem:[%s648 + $0x129] sm:$0xff]
        %v1077 = vld [vmem:[%s648 + $0x139] sm:$0xff]
        %v1078 = vld [vmem:[%s648 + $0x141] sm:$0xff]
        %v1079 = vld [vmem:[%s648 + $0x151] sm:$0xff]
        %v1080 = vld [vmem:[%s648 + $0x159] sm:$0xff]
        %v1081 = vld [vmem:[%s648 + $0x169] sm:$0xff]
        %v1082 = vld [vmem:[%s648 + $0x171] sm:$0xff]
        %v1083 = vlaneseq
        %v1084 = vshrl.u32 %v1083, 7
        %v1085 = vsub.s32 4, %v1084
        %v1086 = vrot.slane %v681, %v1085
        %v1087 = vmul.f32 %v1051, %v1086
        %v1088 = vmul.f32 %v1052, %v1086
        %v1089 = vmul.f32 %v1053, %v1086
        %v1090 = vmul.f32 %v1054, %v1086
        %v1091 = vmul.f32 %v1055, %v1086
        %v1092 = vmul.f32 %v1056, %v1086
        %v1093 = vmul.f32 %v1057, %v1086
        %v1094 = vmul.f32 %v1058, %v1086
        %v1095 = vmul.f32 %v1059, %v1086
        %v1096 = vmul.f32 %v1060, %v1086
        %v1097 = vmul.f32 %v1061, %v1086
        %v1098 = vmul.f32 %v1062, %v1086
        %v1099 = vmul.f32 %v1063, %v1086
        %v1100 = vmul.f32 %v1064, %v1086
        %v1101 = vmul.f32 %v1065, %v1086
        %v1102 = vmul.f32 %v1066, %v1086
        %v1103 = vmul.f32 %v1067, %v1086
        %v1104 = vmul.f32 %v1068, %v1086
        %v1105 = vmul.f32 %v1069, %v1086
        %v1106 = vmul.f32 %v1070, %v1086
        %v1107 = vmul.f32 %v1071, %v1086
        %v1108 = vmul.f32 %v1072, %v1086
        %v1109 = vmul.f32 %v1073, %v1086
        %v1110 = vmul.f32 %v1074, %v1086
        %v1111 = vmul.f32 %v1075, %v1086
        %v1112 = vmul.f32 %v1076, %v1086
        %v1113 = vmul.f32 %v1077, %v1086
        %v1114 = vmul.f32 %v1078, %v1086
        %v1115 = vmul.f32 %v1079, %v1086
        %v1116 = vmul.f32 %v1080, %v1086
        %v1117 = vmul.f32 %v1081, %v1086
        %v1118 = vmul.f32 %v1082, %v1086
        %v1119 = vadd.f32 %v1019, %v1087
        %v1120 = vadd.f32 %v1020, %v1088
        %v1121 = vadd.f32 %v1021, %v1089
        %v1122 = vadd.f32 %v1022, %v1090
        %v1123 = vadd.f32 %v1023, %v1091
        %v1124 = vadd.f32 %v1024, %v1092
        %v1125 = vadd.f32 %v1025, %v1093
        %v1126 = vadd.f32 %v1026, %v1094
        %v1127 = vadd.f32 %v1027, %v1095
        %v1128 = vadd.f32 %v1028, %v1096
        %v1129 = vadd.f32 %v1029, %v1097
        %v1130 = vadd.f32 %v1030, %v1098
        %v1131 = vadd.f32 %v1031, %v1099
        %v1132 = vadd.f32 %v1032, %v1100
        %v1133 = vadd.f32 %v1033, %v1101
        %v1134 = vadd.f32 %v1034, %v1102
        %v1135 = vadd.f32 %v1035, %v1103
        %v1136 = vadd.f32 %v1036, %v1104
        %v1137 = vadd.f32 %v1037, %v1105
        %v1138 = vadd.f32 %v1038, %v1106
        %v1139 = vadd.f32 %v1039, %v1107
        %v1140 = vadd.f32 %v1040, %v1108
        %v1141 = vadd.f32 %v1041, %v1109
        %v1142 = vadd.f32 %v1042, %v1110
        %v1143 = vadd.f32 %v1043, %v1111
        %v1144 = vadd.f32 %v1044, %v1112
        %v1145 = vadd.f32 %v1045, %v1113
        %v1146 = vadd.f32 %v1046, %v1114
        %v1147 = vadd.f32 %v1047, %v1115
        %v1148 = vadd.f32 %v1048, %v1116
        %v1149 = vadd.f32 %v1049, %v1117
        %v1150 = vadd.f32 %v1050, %v1118
        %v1151 = vld [vmem:[%s648 + $0x2] sm:$0xff]
        %v1152 = vld [vmem:[%s648 + $0xa] sm:$0xff]
        %v1153 = vld [vmem:[%s648 + $0x1a] sm:$0xff]
        %v1154 = vld [vmem:[%s648 + $0x22] sm:$0xff]
        %v1155 = vld [vmem:[%s648 + $0x32] sm:$0xff]
        %v1156 = vld [vmem:[%s648 + $0x3a] sm:$0xff]
        %v1157 = vld [vmem:[%s648 + $0x4a] sm:$0xff]
        %v1158 = vld [vmem:[%s648 + $0x52] sm:$0xff]
        %v1159 = vld [vmem:[%s648 + $0x62] sm:$0xff]
        %v1160 = vld [vmem:[%s648 + $0x6a] sm:$0xff]
        %v1161 = vld [vmem:[%s648 + $0x7a] sm:$0xff]
        %v1162 = vld [vmem:[%s648 + $0x82] sm:$0xff]
        %v1163 = vld [vmem:[%s648 + $0x92] sm:$0xff]
        %v1164 = vld [vmem:[%s648 + $0x9a] sm:$0xff]
        %v1165 = vld [vmem:[%s648 + $0xaa] sm:$0xff]
        %v1166 = vld [vmem:[%s648 + $0xb2] sm:$0xff]
        %v1167 = vld [vmem:[%s648 + $0xc2] sm:$0xff]
        %v1168 = vld [vmem:[%s648 + $0xca] sm:$0xff]
        %v1169 = vld [vmem:[%s648 + $0xda] sm:$0xff]
        %v1170 = vld [vmem:[%s648 + $0xe2] sm:$0xff]
        %v1171 = vld [vmem:[%s648 + $0xf2] sm:$0xff]
        %v1172 = vld [vmem:[%s648 + $0xfa] sm:$0xff]
        %v1173 = vld [vmem:[%s648 + $0x10a] sm:$0xff]
        %v1174 = vld [vmem:[%s648 + $0x112] sm:$0xff]
        %v1175 = vld [vmem:[%s648 + $0x122] sm:$0xff]
        %v1176 = vld [vmem:[%s648 + $0x12a] sm:$0xff]
        %v1177 = vld [vmem:[%s648 + $0x13a] sm:$0xff]
        %v1178 = vld [vmem:[%s648 + $0x142] sm:$0xff]
        %v1179 = vld [vmem:[%s648 + $0x152] sm:$0xff]
        %v1180 = vld [vmem:[%s648 + $0x15a] sm:$0xff]
        %v1181 = vld [vmem:[%s648 + $0x16a] sm:$0xff]
        %v1182 = vld [vmem:[%s648 + $0x172] sm:$0xff]
        %v1183 = vlaneseq
        %v1184 = vshrl.u32 %v1183, 7
        %v1185 = vsub.s32 5, %v1184
        %v1186 = vrot.slane %v681, %v1185
        %v1187 = vmul.f32 %v1151, %v1186
        %v1188 = vmul.f32 %v1152, %v1186
        %v1189 = vmul.f32 %v1153, %v1186
        %v1190 = vmul.f32 %v1154, %v1186
        %v1191 = vmul.f32 %v1155, %v1186
        %v1192 = vmul.f32 %v1156, %v1186
        %v1193 = vmul.f32 %v1157, %v1186
        %v1194 = vmul.f32 %v1158, %v1186
        %v1195 = vmul.f32 %v1159, %v1186
        %v1196 = vmul.f32 %v1160, %v1186
        %v1197 = vmul.f32 %v1161, %v1186
        %v1198 = vmul.f32 %v1162, %v1186
        %v1199 = vmul.f32 %v1163, %v1186
        %v1200 = vmul.f32 %v1164, %v1186
        %v1201 = vmul.f32 %v1165, %v1186
        %v1202 = vmul.f32 %v1166, %v1186
        %v1203 = vmul.f32 %v1167, %v1186
        %v1204 = vmul.f32 %v1168, %v1186
        %v1205 = vmul.f32 %v1169, %v1186
        %v1206 = vmul.f32 %v1170, %v1186
        %v1207 = vmul.f32 %v1171, %v1186
        %v1208 = vmul.f32 %v1172, %v1186
        %v1209 = vmul.f32 %v1173, %v1186
        %v1210 = vmul.f32 %v1174, %v1186
        %v1211 = vmul.f32 %v1175, %v1186
        %v1212 = vmul.f32 %v1176, %v1186
        %v1213 = vmul.f32 %v1177, %v1186
        %v1214 = vmul.f32 %v1178, %v1186
        %v1215 = vmul.f32 %v1179, %v1186
        %v1216 = vmul.f32 %v1180, %v1186
        %v1217 = vmul.f32 %v1181, %v1186
        %v1218 = vmul.f32 %v1182, %v1186
        %v1219 = vadd.f32 %v1119, %v1187
        %v1220 = vadd.f32 %v1120, %v1188
        %v1221 = vadd.f32 %v1121, %v1189
        %v1222 = vadd.f32 %v1122, %v1190
        %v1223 = vadd.f32 %v1123, %v1191
        %v1224 = vadd.f32 %v1124, %v1192
        %v1225 = vadd.f32 %v1125, %v1193
        %v1226 = vadd.f32 %v1126, %v1194
        %v1227 = vadd.f32 %v1127, %v1195
        %v1228 = vadd.f32 %v1128, %v1196
        %v1229 = vadd.f32 %v1129, %v1197
        %v1230 = vadd.f32 %v1130, %v1198
        %v1231 = vadd.f32 %v1131, %v1199
        %v1232 = vadd.f32 %v1132, %v1200
        %v1233 = vadd.f32 %v1133, %v1201
        %v1234 = vadd.f32 %v1134, %v1202
        %v1235 = vadd.f32 %v1135, %v1203
        %v1236 = vadd.f32 %v1136, %v1204
        %v1237 = vadd.f32 %v1137, %v1205
        %v1238 = vadd.f32 %v1138, %v1206
        %v1239 = vadd.f32 %v1139, %v1207
        %v1240 = vadd.f32 %v1140, %v1208
        %v1241 = vadd.f32 %v1141, %v1209
        %v1242 = vadd.f32 %v1142, %v1210
        %v1243 = vadd.f32 %v1143, %v1211
        %v1244 = vadd.f32 %v1144, %v1212
        %v1245 = vadd.f32 %v1145, %v1213
        %v1246 = vadd.f32 %v1146, %v1214
        %v1247 = vadd.f32 %v1147, %v1215
        %v1248 = vadd.f32 %v1148, %v1216
        %v1249 = vadd.f32 %v1149, %v1217
        %v1250 = vadd.f32 %v1150, %v1218
        %s1251 = scalar_lea.vmem [#allocation2], 48
        %v1252 = vld [vmem:[%s1251] sm:$0xff]
        %v1253 = vld [vmem:[%s1251 + $0x8] sm:$0xff]
        %v1254 = vld [vmem:[%s1251 + $0x18] sm:$0xff]
        %v1255 = vld [vmem:[%s1251 + $0x20] sm:$0xff]
        %v1256 = vld [vmem:[%s1251 + $0x30] sm:$0xff]
        %v1257 = vld [vmem:[%s1251 + $0x38] sm:$0xff]
        %v1258 = vld [vmem:[%s1251 + $0x48] sm:$0xff]
        %v1259 = vld [vmem:[%s1251 + $0x50] sm:$0xff]
        %v1260 = vld [vmem:[%s1251 + $0x60] sm:$0xff]
        %v1261 = vld [vmem:[%s1251 + $0x68] sm:$0xff]
        %v1262 = vld [vmem:[%s1251 + $0x78] sm:$0xff]
        %v1263 = vld [vmem:[%s1251 + $0x80] sm:$0xff]
        %v1264 = vld [vmem:[%s1251 + $0x90] sm:$0xff]
        %v1265 = vld [vmem:[%s1251 + $0x98] sm:$0xff]
        %v1266 = vld [vmem:[%s1251 + $0xa8] sm:$0xff]
        %v1267 = vld [vmem:[%s1251 + $0xb0] sm:$0xff]
        %v1268 = vld [vmem:[%s1251 + $0xc0] sm:$0xff]
        %v1269 = vld [vmem:[%s1251 + $0xc8] sm:$0xff]
        %v1270 = vld [vmem:[%s1251 + $0xd8] sm:$0xff]
        %v1271 = vld [vmem:[%s1251 + $0xe0] sm:$0xff]
        %v1272 = vld [vmem:[%s1251 + $0xf0] sm:$0xff]
        %v1273 = vld [vmem:[%s1251 + $0xf8] sm:$0xff]
        %v1274 = vld [vmem:[%s1251 + $0x108] sm:$0xff]
        %v1275 = vld [vmem:[%s1251 + $0x110] sm:$0xff]
        %v1276 = vld [vmem:[%s1251 + $0x120] sm:$0xff]
        %v1277 = vld [vmem:[%s1251 + $0x128] sm:$0xff]
        %v1278 = vld [vmem:[%s1251 + $0x138] sm:$0xff]
        %v1279 = vld [vmem:[%s1251 + $0x140] sm:$0xff]
        %v1280 = vld [vmem:[%s1251 + $0x150] sm:$0xff]
        %v1281 = vld [vmem:[%s1251 + $0x158] sm:$0xff]
        %v1282 = vld [vmem:[%s1251 + $0x168] sm:$0xff]
        %v1283 = vld [vmem:[%s1251 + $0x170] sm:$0xff]
        %v1284 = vlaneseq
        %v1285 = vshrl.u32 %v1284, 7
        %v1286 = vsub.s32 6, %v1285
        %v1287 = vrot.slane %v681, %v1286
        %v1288 = vmul.f32 %v1252, %v1287
        %v1289 = vmul.f32 %v1253, %v1287
        %v1290 = vmul.f32 %v1254, %v1287
        %v1291 = vmul.f32 %v1255, %v1287
        %v1292 = vmul.f32 %v1256, %v1287
        %v1293 = vmul.f32 %v1257, %v1287
        %v1294 = vmul.f32 %v1258, %v1287
        %v1295 = vmul.f32 %v1259, %v1287
        %v1296 = vmul.f32 %v1260, %v1287
        %v1297 = vmul.f32 %v1261, %v1287
        %v1298 = vmul.f32 %v1262, %v1287
        %v1299 = vmul.f32 %v1263, %v1287
        %v1300 = vmul.f32 %v1264, %v1287
        %v1301 = vmul.f32 %v1265, %v1287
        %v1302 = vmul.f32 %v1266, %v1287
        %v1303 = vmul.f32 %v1267, %v1287
        %v1304 = vmul.f32 %v1268, %v1287
        %v1305 = vmul.f32 %v1269, %v1287
        %v1306 = vmul.f32 %v1270, %v1287
        %v1307 = vmul.f32 %v1271, %v1287
        %v1308 = vmul.f32 %v1272, %v1287
        %v1309 = vmul.f32 %v1273, %v1287
        %v1310 = vmul.f32 %v1274, %v1287
        %v1311 = vmul.f32 %v1275, %v1287
        %v1312 = vmul.f32 %v1276, %v1287
        %v1313 = vmul.f32 %v1277, %v1287
        %v1314 = vmul.f32 %v1278, %v1287
        %v1315 = vmul.f32 %v1279, %v1287
        %v1316 = vmul.f32 %v1280, %v1287
        %v1317 = vmul.f32 %v1281, %v1287
        %v1318 = vmul.f32 %v1282, %v1287
        %v1319 = vmul.f32 %v1283, %v1287
        %v1320 = vadd.f32 %v1219, %v1288
        %v1321 = vadd.f32 %v1220, %v1289
        %v1322 = vadd.f32 %v1221, %v1290
        %v1323 = vadd.f32 %v1222, %v1291
        %v1324 = vadd.f32 %v1223, %v1292
        %v1325 = vadd.f32 %v1224, %v1293
        %v1326 = vadd.f32 %v1225, %v1294
        %v1327 = vadd.f32 %v1226, %v1295
        %v1328 = vadd.f32 %v1227, %v1296
        %v1329 = vadd.f32 %v1228, %v1297
        %v1330 = vadd.f32 %v1229, %v1298
        %v1331 = vadd.f32 %v1230, %v1299
        %v1332 = vadd.f32 %v1231, %v1300
        %v1333 = vadd.f32 %v1232, %v1301
        %v1334 = vadd.f32 %v1233, %v1302
        %v1335 = vadd.f32 %v1234, %v1303
        %v1336 = vadd.f32 %v1235, %v1304
        %v1337 = vadd.f32 %v1236, %v1305
        %v1338 = vadd.f32 %v1237, %v1306
        %v1339 = vadd.f32 %v1238, %v1307
        %v1340 = vadd.f32 %v1239, %v1308
        %v1341 = vadd.f32 %v1240, %v1309
        %v1342 = vadd.f32 %v1241, %v1310
        %v1343 = vadd.f32 %v1242, %v1311
        %v1344 = vadd.f32 %v1243, %v1312
        %v1345 = vadd.f32 %v1244, %v1313
        %v1346 = vadd.f32 %v1245, %v1314
        %v1347 = vadd.f32 %v1246, %v1315
        %v1348 = vadd.f32 %v1247, %v1316
        %v1349 = vadd.f32 %v1248, %v1317
        %v1350 = vadd.f32 %v1249, %v1318
        %v1351 = vadd.f32 %v1250, %v1319
        %v1352 = vld [vmem:[%s1251 + $0x1] sm:$0xff]
        %v1353 = vld [vmem:[%s1251 + $0x9] sm:$0xff]
        %v1354 = vld [vmem:[%s1251 + $0x19] sm:$0xff]
        %v1355 = vld [vmem:[%s1251 + $0x21] sm:$0xff]
        %v1356 = vld [vmem:[%s1251 + $0x31] sm:$0xff]
        %v1357 = vld [vmem:[%s1251 + $0x39] sm:$0xff]
        %v1358 = vld [vmem:[%s1251 + $0x49] sm:$0xff]
        %v1359 = vld [vmem:[%s1251 + $0x51] sm:$0xff]
        %v1360 = vld [vmem:[%s1251 + $0x61] sm:$0xff]
        %v1361 = vld [vmem:[%s1251 + $0x69] sm:$0xff]
        %v1362 = vld [vmem:[%s1251 + $0x79] sm:$0xff]
        %v1363 = vld [vmem:[%s1251 + $0x81] sm:$0xff]
        %v1364 = vld [vmem:[%s1251 + $0x91] sm:$0xff]
        %v1365 = vld [vmem:[%s1251 + $0x99] sm:$0xff]
        %v1366 = vld [vmem:[%s1251 + $0xa9] sm:$0xff]
        %v1367 = vld [vmem:[%s1251 + $0xb1] sm:$0xff]
        %v1368 = vld [vmem:[%s1251 + $0xc1] sm:$0xff]
        %v1369 = vld [vmem:[%s1251 + $0xc9] sm:$0xff]
        %v1370 = vld [vmem:[%s1251 + $0xd9] sm:$0xff]
        %v1371 = vld [vmem:[%s1251 + $0xe1] sm:$0xff]
        %v1372 = vld [vmem:[%s1251 + $0xf1] sm:$0xff]
        %v1373 = vld [vmem:[%s1251 + $0xf9] sm:$0xff]
        %v1374 = vld [vmem:[%s1251 + $0x109] sm:$0xff]
        %v1375 = vld [vmem:[%s1251 + $0x111] sm:$0xff]
        %v1376 = vld [vmem:[%s1251 + $0x121] sm:$0xff]
        %v1377 = vld [vmem:[%s1251 + $0x129] sm:$0xff]
        %v1378 = vld [vmem:[%s1251 + $0x139] sm:$0xff]
        %v1379 = vld [vmem:[%s1251 + $0x141] sm:$0xff]
        %v1380 = vld [vmem:[%s1251 + $0x151] sm:$0xff]
        %v1381 = vld [vmem:[%s1251 + $0x159] sm:$0xff]
        %v1382 = vld [vmem:[%s1251 + $0x169] sm:$0xff]
        %v1383 = vld [vmem:[%s1251 + $0x171] sm:$0xff]
        %v1384 = vlaneseq
        %v1385 = vshrl.u32 %v1384, 7
        %v1386 = vsub.s32 7, %v1385
        %v1387 = vrot.slane %v681, %v1386
        %v1388 = vmul.f32 %v1352, %v1387
        %v1389 = vmul.f32 %v1353, %v1387
        %v1390 = vmul.f32 %v1354, %v1387
        %v1391 = vmul.f32 %v1355, %v1387
        %v1392 = vmul.f32 %v1356, %v1387
        %v1393 = vmul.f32 %v1357, %v1387
        %v1394 = vmul.f32 %v1358, %v1387
        %v1395 = vmul.f32 %v1359, %v1387
        %v1396 = vmul.f32 %v1360, %v1387
        %v1397 = vmul.f32 %v1361, %v1387
        %v1398 = vmul.f32 %v1362, %v1387
        %v1399 = vmul.f32 %v1363, %v1387
        %v1400 = vmul.f32 %v1364, %v1387
        %v1401 = vmul.f32 %v1365, %v1387
        %v1402 = vmul.f32 %v1366, %v1387
        %v1403 = vmul.f32 %v1367, %v1387
        %v1404 = vmul.f32 %v1368, %v1387
        %v1405 = vmul.f32 %v1369, %v1387
        %v1406 = vmul.f32 %v1370, %v1387
        %v1407 = vmul.f32 %v1371, %v1387
        %v1408 = vmul.f32 %v1372, %v1387
        %v1409 = vmul.f32 %v1373, %v1387
        %v1410 = vmul.f32 %v1374, %v1387
        %v1411 = vmul.f32 %v1375, %v1387
        %v1412 = vmul.f32 %v1376, %v1387
        %v1413 = vmul.f32 %v1377, %v1387
        %v1414 = vmul.f32 %v1378, %v1387
        %v1415 = vmul.f32 %v1379, %v1387
        %v1416 = vmul.f32 %v1380, %v1387
        %v1417 = vmul.f32 %v1381, %v1387
        %v1418 = vmul.f32 %v1382, %v1387
        %v1419 = vmul.f32 %v1383, %v1387
        %v1420 = vadd.f32 %v1320, %v1388
        %v1421 = vadd.f32 %v1321, %v1389
        %v1422 = vadd.f32 %v1322, %v1390
        %v1423 = vadd.f32 %v1323, %v1391
        %v1424 = vadd.f32 %v1324, %v1392
        %v1425 = vadd.f32 %v1325, %v1393
        %v1426 = vadd.f32 %v1326, %v1394
        %v1427 = vadd.f32 %v1327, %v1395
        %v1428 = vadd.f32 %v1328, %v1396
        %v1429 = vadd.f32 %v1329, %v1397
        %v1430 = vadd.f32 %v1330, %v1398
        %v1431 = vadd.f32 %v1331, %v1399
        %v1432 = vadd.f32 %v1332, %v1400
        %v1433 = vadd.f32 %v1333, %v1401
        %v1434 = vadd.f32 %v1334, %v1402
        %v1435 = vadd.f32 %v1335, %v1403
        %v1436 = vadd.f32 %v1336, %v1404
        %v1437 = vadd.f32 %v1337, %v1405
        %v1438 = vadd.f32 %v1338, %v1406
        %v1439 = vadd.f32 %v1339, %v1407
        %v1440 = vadd.f32 %v1340, %v1408
        %v1441 = vadd.f32 %v1341, %v1409
        %v1442 = vadd.f32 %v1342, %v1410
        %v1443 = vadd.f32 %v1343, %v1411
        %v1444 = vadd.f32 %v1344, %v1412
        %v1445 = vadd.f32 %v1345, %v1413
        %v1446 = vadd.f32 %v1346, %v1414
        %v1447 = vadd.f32 %v1347, %v1415
        %v1448 = vadd.f32 %v1348, %v1416
        %v1449 = vadd.f32 %v1349, %v1417
        %v1450 = vadd.f32 %v1350, %v1418
        %v1451 = vadd.f32 %v1351, %v1419
        %v1452 = vld [vmem:[%s1251 + $0x2] sm:$0xff]
        %v1453 = vld [vmem:[%s1251 + $0xa] sm:$0xff]
        %v1454 = vld [vmem:[%s1251 + $0x1a] sm:$0xff]
        %v1455 = vld [vmem:[%s1251 + $0x22] sm:$0xff]
        %v1456 = vld [vmem:[%s1251 + $0x32] sm:$0xff]
        %v1457 = vld [vmem:[%s1251 + $0x3a] sm:$0xff]
        %v1458 = vld [vmem:[%s1251 + $0x4a] sm:$0xff]
        %v1459 = vld [vmem:[%s1251 + $0x52] sm:$0xff]
        %v1460 = vld [vmem:[%s1251 + $0x62] sm:$0xff]
        %v1461 = vld [vmem:[%s1251 + $0x6a] sm:$0xff]
        %v1462 = vld [vmem:[%s1251 + $0x7a] sm:$0xff]
        %v1463 = vld [vmem:[%s1251 + $0x82] sm:$0xff]
        %v1464 = vld [vmem:[%s1251 + $0x92] sm:$0xff]
        %v1465 = vld [vmem:[%s1251 + $0x9a] sm:$0xff]
        %v1466 = vld [vmem:[%s1251 + $0xaa] sm:$0xff]
        %v1467 = vld [vmem:[%s1251 + $0xb2] sm:$0xff]
        %v1468 = vld [vmem:[%s1251 + $0xc2] sm:$0xff]
        %v1469 = vld [vmem:[%s1251 + $0xca] sm:$0xff]
        %v1470 = vld [vmem:[%s1251 + $0xda] sm:$0xff]
        %v1471 = vld [vmem:[%s1251 + $0xe2] sm:$0xff]
        %v1472 = vld [vmem:[%s1251 + $0xf2] sm:$0xff]
        %v1473 = vld [vmem:[%s1251 + $0xfa] sm:$0xff]
        %v1474 = vld [vmem:[%s1251 + $0x10a] sm:$0xff]
        %v1475 = vld [vmem:[%s1251 + $0x112] sm:$0xff]
        %v1476 = vld [vmem:[%s1251 + $0x122] sm:$0xff]
        %v1477 = vld [vmem:[%s1251 + $0x12a] sm:$0xff]
        %v1478 = vld [vmem:[%s1251 + $0x13a] sm:$0xff]
        %v1479 = vld [vmem:[%s1251 + $0x142] sm:$0xff]
        %v1480 = vld [vmem:[%s1251 + $0x152] sm:$0xff]
        %v1481 = vld [vmem:[%s1251 + $0x15a] sm:$0xff]
        %v1482 = vld [vmem:[%s1251 + $0x16a] sm:$0xff]
        %v1483 = vld [vmem:[%s1251 + $0x172] sm:$0xff]
        %v1484 = vlaneseq
        %v1485 = vshrl.u32 %v1484, 7
        %v1486 = vsub.s32 0, %v1485
        %v1487 = vrot.slane %v682, %v1486
        %v1488 = vmul.f32 %v1452, %v1487
        %v1489 = vmul.f32 %v1453, %v1487
        %v1490 = vmul.f32 %v1454, %v1487
        %v1491 = vmul.f32 %v1455, %v1487
        %v1492 = vmul.f32 %v1456, %v1487
        %v1493 = vmul.f32 %v1457, %v1487
        %v1494 = vmul.f32 %v1458, %v1487
        %v1495 = vmul.f32 %v1459, %v1487
        %v1496 = vmul.f32 %v1460, %v1487
        %v1497 = vmul.f32 %v1461, %v1487
        %v1498 = vmul.f32 %v1462, %v1487
        %v1499 = vmul.f32 %v1463, %v1487
        %v1500 = vmul.f32 %v1464, %v1487
        %v1501 = vmul.f32 %v1465, %v1487
        %v1502 = vmul.f32 %v1466, %v1487
        %v1503 = vmul.f32 %v1467, %v1487
        %v1504 = vmul.f32 %v1468, %v1487
        %v1505 = vmul.f32 %v1469, %v1487
        %v1506 = vmul.f32 %v1470, %v1487
        %v1507 = vmul.f32 %v1471, %v1487
        %v1508 = vmul.f32 %v1472, %v1487
        %v1509 = vmul.f32 %v1473, %v1487
        %v1510 = vmul.f32 %v1474, %v1487
        %v1511 = vmul.f32 %v1475, %v1487
        %v1512 = vmul.f32 %v1476, %v1487
        %v1513 = vmul.f32 %v1477, %v1487
        %v1514 = vmul.f32 %v1478, %v1487
        %v1515 = vmul.f32 %v1479, %v1487
        %v1516 = vmul.f32 %v1480, %v1487
        %v1517 = vmul.f32 %v1481, %v1487
        %v1518 = vmul.f32 %v1482, %v1487
        %v1519 = vmul.f32 %v1483, %v1487
        %v1520 = vadd.f32 %v1420, %v1488
        %v1521 = vadd.f32 %v1421, %v1489
        %v1522 = vadd.f32 %v1422, %v1490
        %v1523 = vadd.f32 %v1423, %v1491
        %v1524 = vadd.f32 %v1424, %v1492
        %v1525 = vadd.f32 %v1425, %v1493
        %v1526 = vadd.f32 %v1426, %v1494
        %v1527 = vadd.f32 %v1427, %v1495
        %v1528 = vadd.f32 %v1428, %v1496
        %v1529 = vadd.f32 %v1429, %v1497
        %v1530 = vadd.f32 %v1430, %v1498
        %v1531 = vadd.f32 %v1431, %v1499
        %v1532 = vadd.f32 %v1432, %v1500
        %v1533 = vadd.f32 %v1433, %v1501
        %v1534 = vadd.f32 %v1434, %v1502
        %v1535 = vadd.f32 %v1435, %v1503
        %v1536 = vadd.f32 %v1436, %v1504
        %v1537 = vadd.f32 %v1437, %v1505
        %v1538 = vadd.f32 %v1438, %v1506
        %v1539 = vadd.f32 %v1439, %v1507
        %v1540 = vadd.f32 %v1440, %v1508
        %v1541 = vadd.f32 %v1441, %v1509
        %v1542 = vadd.f32 %v1442, %v1510
        %v1543 = vadd.f32 %v1443, %v1511
        %v1544 = vadd.f32 %v1444, %v1512
        %v1545 = vadd.f32 %v1445, %v1513
        %v1546 = vadd.f32 %v1446, %v1514
        %v1547 = vadd.f32 %v1447, %v1515
        %v1548 = vadd.f32 %v1448, %v1516
        %v1549 = vadd.f32 %v1449, %v1517
        %v1550 = vadd.f32 %v1450, %v1518
        %v1551 = vadd.f32 %v1451, %v1519
        %v1552 = vld [vmem:[%s4] sm:$0x1]
        %v1554 = vlaneseq
        %v1555 = vshrl.u32 %v1554, 7
        %v1556 = vsub.s32 0, %v1555
        %v1557 = vrot.slane %v1552, %v1556
        %v1559 = vadd.f32 %v1520, %v1557
        %v1560 = vadd.f32 %v1521, %v1557
        %v1561 = vadd.f32 %v1522, %v1557
        %v1562 = vadd.f32 %v1523, %v1557
        %v1563 = vadd.f32 %v1524, %v1557
        %v1564 = vadd.f32 %v1525, %v1557
        %v1565 = vadd.f32 %v1526, %v1557
        %v1566 = vadd.f32 %v1527, %v1557
        %v1567 = vadd.f32 %v1528, %v1557
        %v1568 = vadd.f32 %v1529, %v1557
        %v1569 = vadd.f32 %v1530, %v1557
        %v1570 = vadd.f32 %v1531, %v1557
        %v1571 = vadd.f32 %v1532, %v1557
        %v1572 = vadd.f32 %v1533, %v1557
        %v1573 = vadd.f32 %v1534, %v1557
        %v1574 = vadd.f32 %v1535, %v1557
        %v1575 = vadd.f32 %v1536, %v1557
        %v1576 = vadd.f32 %v1537, %v1557
        %v1577 = vadd.f32 %v1538, %v1557
        %v1578 = vadd.f32 %v1539, %v1557
        %v1579 = vadd.f32 %v1540, %v1557
        %v1580 = vadd.f32 %v1541, %v1557
        %v1581 = vadd.f32 %v1542, %v1557
        %v1582 = vadd.f32 %v1543, %v1557
        %v1583 = vadd.f32 %v1544, %v1557
        %v1584 = vadd.f32 %v1545, %v1557
        %v1585 = vadd.f32 %v1546, %v1557
        %v1586 = vadd.f32 %v1547, %v1557
        %v1587 = vadd.f32 %v1548, %v1557
        %v1588 = vadd.f32 %v1549, %v1557
        %v1589 = vadd.f32 %v1550, %v1557
        %v1590 = vadd.f32 %v1551, %v1557
        %v1591 = vmax.f32 %v1559, 0.0
        %v1592 = vmax.f32 %v1560, 0.0
        %v1593 = vmax.f32 %v1561, 0.0
        %v1594 = vmax.f32 %v1562, 0.0
        %v1595 = vmax.f32 %v1563, 0.0
        %v1596 = vmax.f32 %v1564, 0.0
        %v1597 = vmax.f32 %v1565, 0.0
        %v1598 = vmax.f32 %v1566, 0.0
        %v1599 = vmax.f32 %v1567, 0.0
        %v1600 = vmax.f32 %v1568, 0.0
        %v1601 = vmax.f32 %v1569, 0.0
        %v1602 = vmax.f32 %v1570, 0.0
        %v1603 = vmax.f32 %v1571, 0.0
        %v1604 = vmax.f32 %v1572, 0.0
        %v1605 = vmax.f32 %v1573, 0.0
        %v1606 = vmax.f32 %v1574, 0.0
        %v1607 = vmax.f32 %v1575, 0.0
        %v1608 = vmax.f32 %v1576, 0.0
        %v1609 = vmax.f32 %v1577, 0.0
        %v1610 = vmax.f32 %v1578, 0.0
        %v1611 = vmax.f32 %v1579, 0.0
        %v1612 = vmax.f32 %v1580, 0.0
        %v1613 = vmax.f32 %v1581, 0.0
        %v1614 = vmax.f32 %v1582, 0.0
        %v1615 = vmax.f32 %v1583, 0.0
        %v1616 = vmax.f32 %v1584, 0.0
        %v1617 = vmax.f32 %v1585, 0.0
        %v1618 = vmax.f32 %v1586, 0.0
        %v1619 = vmax.f32 %v1587, 0.0
        %v1620 = vmax.f32 %v1588, 0.0
        %v1621 = vmax.f32 %v1589, 0.0
        %v1622 = vmax.f32 %v1590, 0.0
        %1623 = vst.msk [vmem:[%s217] sm:$0xff] %vm351, %v561
        %1624 = vst.msk [vmem:[%s217 + $0x8] sm:$0xff] %vm351, %v562
        %1625 = vst.msk [vmem:[%s217 + $0x10] sm:$0xff] %vm351, %v563
        %1626 = vst.msk [vmem:[%s217 + $0x18] sm:$0xff] %vm351, %v564
        %1627 = vst.msk [vmem:[%s217 + $0x20] sm:$0xff] %vm351, %v565
        %1628 = vst.msk [vmem:[%s217 + $0x28] sm:$0xff] %vm351, %v566
        %1629 = vst.msk [vmem:[%s217 + $0x30] sm:$0xff] %vm351, %v567
        %1630 = vst.msk [vmem:[%s217 + $0x38] sm:$0xff] %vm351, %v568
        %1631 = vst.msk [vmem:[%s217 + $0x40] sm:$0xff] %vm351, %v569
        %1632 = vst.msk [vmem:[%s217 + $0x48] sm:$0xff] %vm351, %v570
        %1633 = vst.msk [vmem:[%s217 + $0x50] sm:$0xff] %vm351, %v571
        %1634 = vst.msk [vmem:[%s217 + $0x58] sm:$0xff] %vm351, %v572
        %1635 = vst.msk [vmem:[%s217 + $0x60] sm:$0xff] %vm351, %v573
        %1636 = vst.msk [vmem:[%s217 + $0x68] sm:$0xff] %vm351, %v574
        %1637 = vst.msk [vmem:[%s217 + $0x70] sm:$0xff] %vm351, %v575
        %1638 = vst.msk [vmem:[%s217 + $0x78] sm:$0xff] %vm351, %v576
        %1639 = vst.msk [vmem:[%s217 + $0x80] sm:$0xff] %vm351, %v577
        %1640 = vst.msk [vmem:[%s217 + $0x88] sm:$0xff] %vm351, %v578
        %1641 = vst.msk [vmem:[%s217 + $0x90] sm:$0xff] %vm351, %v579
        %1642 = vst.msk [vmem:[%s217 + $0x98] sm:$0xff] %vm351, %v580
        %1643 = vst.msk [vmem:[%s217 + $0xa0] sm:$0xff] %vm351, %v581
        %1644 = vst.msk [vmem:[%s217 + $0xa8] sm:$0xff] %vm351, %v582
        %1645 = vst.msk [vmem:[%s217 + $0xb0] sm:$0xff] %vm351, %v583
        %1646 = vst.msk [vmem:[%s217 + $0xb8] sm:$0xff] %vm351, %v584
        %1647 = vst.msk [vmem:[%s217 + $0xc0] sm:$0xff] %vm351, %v585
        %1648 = vst.msk [vmem:[%s217 + $0xc8] sm:$0xff] %vm351, %v586
        %1649 = vst.msk [vmem:[%s217 + $0xd0] sm:$0xff] %vm351, %v587
        %1650 = vst.msk [vmem:[%s217 + $0xd8] sm:$0xff] %vm351, %v588
        %1651 = vst.msk [vmem:[%s217 + $0xe0] sm:$0xff] %vm351, %v589
        %1652 = vst.msk [vmem:[%s217 + $0xe8] sm:$0xff] %vm351, %v590
        %1653 = vst.msk [vmem:[%s217 + $0xf0] sm:$0xff] %vm351, %v591
        %1654 = vst.msk [vmem:[%s217 + $0xf8] sm:$0xff] %vm351, %v592
        %1687 = vrot.lane.b32.xlu0 %v1591, 16
        %v1688 = vpop.permute.xlu0 %1687
        %1689 = vrot.lane.b32.xlu0 %v1592, 16
        %v1690 = vpop.permute.xlu0 %1689
        %1691 = vrot.lane.b32.xlu0 %v1593, 16
        %v1692 = vpop.permute.xlu0 %1691
        %1693 = vrot.lane.b32.xlu0 %v1594, 16
        %v1694 = vpop.permute.xlu0 %1693
        %1695 = vrot.lane.b32.xlu0 %v1595, 16
        %v1696 = vpop.permute.xlu0 %1695
        %1697 = vrot.lane.b32.xlu0 %v1596, 16
        %v1698 = vpop.permute.xlu0 %1697
        %1699 = vrot.lane.b32.xlu0 %v1597, 16
        %v1700 = vpop.permute.xlu0 %1699
        %1701 = vrot.lane.b32.xlu0 %v1598, 16
        %v1702 = vpop.permute.xlu0 %1701
        %1703 = vrot.lane.b32.xlu0 %v1599, 16
        %v1704 = vpop.permute.xlu0 %1703
        %1705 = vrot.lane.b32.xlu0 %v1600, 16
        %v1706 = vpop.permute.xlu0 %1705
        %1707 = vrot.lane.b32.xlu0 %v1601, 16
        %v1708 = vpop.permute.xlu0 %1707
        %1709 = vrot.lane.b32.xlu0 %v1602, 16
        %v1710 = vpop.permute.xlu0 %1709
        %1711 = vrot.lane.b32.xlu0 %v1603, 16
        %v1712 = vpop.permute.xlu0 %1711
        %1713 = vrot.lane.b32.xlu0 %v1604, 16
        %v1714 = vpop.permute.xlu0 %1713
        %1715 = vrot.lane.b32.xlu0 %v1605, 16
        %v1716 = vpop.permute.xlu0 %1715
        %1717 = vrot.lane.b32.xlu0 %v1606, 16
        %v1718 = vpop.permute.xlu0 %1717
        %1719 = vrot.lane.b32.xlu0 %v1607, 16
        %v1720 = vpop.permute.xlu0 %1719
        %1721 = vrot.lane.b32.xlu0 %v1608, 16
        %v1722 = vpop.permute.xlu0 %1721
        %1723 = vrot.lane.b32.xlu0 %v1609, 16
        %v1724 = vpop.permute.xlu0 %1723
        %1725 = vrot.lane.b32.xlu0 %v1610, 16
        %v1726 = vpop.permute.xlu0 %1725
        %1727 = vrot.lane.b32.xlu0 %v1611, 16
        %v1728 = vpop.permute.xlu0 %1727
        %1729 = vrot.lane.b32.xlu0 %v1612, 16
        %v1730 = vpop.permute.xlu0 %1729
        %1731 = vrot.lane.b32.xlu0 %v1613, 16
        %v1732 = vpop.permute.xlu0 %1731
        %1733 = vrot.lane.b32.xlu0 %v1614, 16
        %v1734 = vpop.permute.xlu0 %1733
        %1735 = vrot.lane.b32.xlu0 %v1615, 16
        %v1736 = vpop.permute.xlu0 %1735
        %1737 = vrot.lane.b32.xlu0 %v1616, 16
        %v1738 = vpop.permute.xlu0 %1737
        %1739 = vrot.lane.b32.xlu0 %v1617, 16
        %v1740 = vpop.permute.xlu0 %1739
        %1741 = vrot.lane.b32.xlu0 %v1618, 16
        %v1742 = vpop.permute.xlu0 %1741
        %1743 = vrot.lane.b32.xlu0 %v1619, 16
        %v1744 = vpop.permute.xlu0 %1743
        %1745 = vrot.lane.b32.xlu0 %v1620, 16
        %v1746 = vpop.permute.xlu0 %1745
        %1747 = vrot.lane.b32.xlu0 %v1621, 16
        %v1748 = vpop.permute.xlu0 %1747
        %1749 = vrot.lane.b32.xlu0 %v1622, 16
        %v1750 = vpop.permute.xlu0 %1749
        %vm1783 = vcmask 261248
        %1784 = vst.msk [vmem:[%s217] sm:$0xff] %vm1783, %v1688
        %1785 = vst.msk [vmem:[%s217 + $0x8] sm:$0xff] %vm1783, %v1690
        %1786 = vst.msk [vmem:[%s217 + $0x10] sm:$0xff] %vm1783, %v1692
        %1787 = vst.msk [vmem:[%s217 + $0x18] sm:$0xff] %vm1783, %v1694
        %1788 = vst.msk [vmem:[%s217 + $0x20] sm:$0xff] %vm1783, %v1696
        %1789 = vst.msk [vmem:[%s217 + $0x28] sm:$0xff] %vm1783, %v1698
        %1790 = vst.msk [vmem:[%s217 + $0x30] sm:$0xff] %vm1783, %v1700
        %1791 = vst.msk [vmem:[%s217 + $0x38] sm:$0xff] %vm1783, %v1702
        %1792 = vst.msk [vmem:[%s217 + $0x40] sm:$0xff] %vm1783, %v1704
        %1793 = vst.msk [vmem:[%s217 + $0x48] sm:$0xff] %vm1783, %v1706
        %1794 = vst.msk [vmem:[%s217 + $0x50] sm:$0xff] %vm1783, %v1708
        %1795 = vst.msk [vmem:[%s217 + $0x58] sm:$0xff] %vm1783, %v1710
        %1796 = vst.msk [vmem:[%s217 + $0x60] sm:$0xff] %vm1783, %v1712
        %1797 = vst.msk [vmem:[%s217 + $0x68] sm:$0xff] %vm1783, %v1714
        %1798 = vst.msk [vmem:[%s217 + $0x70] sm:$0xff] %vm1783, %v1716
        %1799 = vst.msk [vmem:[%s217 + $0x78] sm:$0xff] %vm1783, %v1718
        %1800 = vst.msk [vmem:[%s217 + $0x80] sm:$0xff] %vm1783, %v1720
        %1801 = vst.msk [vmem:[%s217 + $0x88] sm:$0xff] %vm1783, %v1722
        %1802 = vst.msk [vmem:[%s217 + $0x90] sm:$0xff] %vm1783, %v1724
        %1803 = vst.msk [vmem:[%s217 + $0x98] sm:$0xff] %vm1783, %v1726
        %1804 = vst.msk [vmem:[%s217 + $0xa0] sm:$0xff] %vm1783, %v1728
        %1805 = vst.msk [vmem:[%s217 + $0xa8] sm:$0xff] %vm1783, %v1730
        %1806 = vst.msk [vmem:[%s217 + $0xb0] sm:$0xff] %vm1783, %v1732
        %1807 = vst.msk [vmem:[%s217 + $0xb8] sm:$0xff] %vm1783, %v1734
        %1808 = vst.msk [vmem:[%s217 + $0xc0] sm:$0xff] %vm1783, %v1736
        %1809 = vst.msk [vmem:[%s217 + $0xc8] sm:$0xff] %vm1783, %v1738
        %1810 = vst.msk [vmem:[%s217 + $0xd0] sm:$0xff] %vm1783, %v1740
        %1811 = vst.msk [vmem:[%s217 + $0xd8] sm:$0xff] %vm1783, %v1742
        %1812 = vst.msk [vmem:[%s217 + $0xe0] sm:$0xff] %vm1783, %v1744
        %1813 = vst.msk [vmem:[%s217 + $0xe8] sm:$0xff] %vm1783, %v1746
        %1814 = vst.msk [vmem:[%s217 + $0xf0] sm:$0xff] %vm1783, %v1748
        %1815 = vst.msk [vmem:[%s217 + $0xf8] sm:$0xff] %vm1783, %v1750
        %s1816 = sand.u32 %s137, 1
        %s1817 = scalar_lea.sflag [#allocation4], %s1816
        %s1818 = sand.u32 %s137, 1
        %s1819 = smul.addr %s1818, 256
        %s1820 = scalar_lea.vmem [#allocation3], %s1819
        // Predicated region
        $region41: #{ghost_module_apply.1} parent=39 // pred_check
          %p1821 = pneg %p147
        $region42: #{ghost_module_apply.1} parent=39 // pred_check_branch
          %1823 = sbr.rel (%p1821) target = $region44
        $region43: #{ghost_module_apply.1} parent=39 // pred_region
          %s1825 = ssub.s32 4096, 4096
          %1826 = vsyncadd %s1817, %s1825
          %s1827 = smul.addr %s19, 32
          %s1828 = smul.addr %s1827, 128
          %s1829 = scalar_lea.hbm %s5, %s1828
          %s1830 = sshll.u32 %s1820, 4
          %s1831 = int_to_ptr.vmem [resolvable:$true] %s1830
          %1836 = dma.vmem_to_hbm [thread:$0]  %s1831, 4096, %s1829, %s1817, 128, 128, 8
        $region44: #{ghost_module_apply.1} parent=39 // pred_fallthru
          _
      $region40: #{ghost_module_apply.1} parent=5 // pred_fallthru
        _
      %p1837 = scmp.le.s32.totalorder 2, %s14
      // Predicated region
      $region45: #{ghost_module_apply.1} parent=5 // pred_check
        %p1838 = pneg %p1837
      $region46: #{ghost_module_apply.1} parent=5 // pred_check_branch
        %1840 = sbr.rel (%p1838) target = $region48
      $region47: #{ghost_module_apply.1} parent=5 // pred_region
        %s1841 = ssub.s32 %s14, 2
        // Predicated region
        $region49: #{ghost_module_apply.1} parent=47 // pred_check
          %p1842 = pneg %p153
        $region50: #{ghost_module_apply.1} parent=47 // pred_check_branch
          %1844 = sbr.rel (%p1842) target = $region52
        $region51: #{ghost_module_apply.1} parent=47 // pred_region
          %s1845 = sand.u32 %s138, 1
          %s1846 = scalar_lea.sflag [#allocation4], %s1845
          %s1847 = sand.u32 %s138, 1
          %s1848 = smul.addr %s1847, 256
          %s1849 = scalar_lea.vmem [#allocation3], %s1848
          %1850 = dma.done %s1846, 4096
        $region52: #{ghost_module_apply.1} parent=47 // pred_fallthru
          _
      $region48: #{ghost_module_apply.1} parent=5 // pred_fallthru
        _
    $region6: #{ghost_module_apply.1} parent=1 // loop_footer
      %s18 = sadd.s32 1, %s14
    $region7: #{ghost_module_apply.1} parent=1 // loop_footer_branch
      %13 = sbr.rel target = $region3
    $region8: #{ghost_module_apply.1} parent=1 // loop_exit
      _
    %1851 = vsyncpa [#allocation4], 1
    %s1852 = scalar_lea.sflag [#allocation4], 1
    %1853 = vsyncpa %s1852, 1

</llo_original>
